<compile_context>
chip_gen: v5e
topology: v5e:2x2
jax: 0.10.0
libtpu: 0.0.40
codegen_flags: <defaults>
</compile_context>

<pallas_src>
import numpy as np
import jax
import jax.numpy as jnp
from jax import lax
from jax.experimental import pallas as pl
from jax.experimental.pallas import tpu as pltpu

PAD = 18            # max dilation; one zero-pad of 18 serves dilations 6/12/18
HW_T_TARGET = 512   # rows per grid step (>=512 amortizes ~0.35us step overhead)
K_T_TARGET = 2048   # contraction tile (tiles stay inside v7x 32 MiB scoped VMEM)


def _round_up(a, b):
    return ((a + b - 1) // b) * b


def aspp_kernel(xcol_ref, wbig_ref, row_ref, out_ref, acc_ref):
    """One (HW_t, K_t) @ (K_t, Cf) accumulation step of the fused ASPP GEMM."""
    k = pl.program_id(2)

    @pl.when(k == 0)
    def _():
        # Seed the accumulator with the per-batch pooled-branch + bias row:
        # that branch is constant over HxW, so one broadcast does it all.
        acc_ref[...] = jnp.broadcast_to(row_ref[...], acc_ref.shape)

    acc_ref[...] += jnp.dot(xcol_ref[...], wbig_ref[...],
                            preferred_element_type=jnp.float32)

    @pl.when(k == pl.num_programs(2) - 1)
    def _():
        out_ref[...] = acc_ref[...].astype(out_ref.dtype)


def aspp_pallas(x_nchw, params):
    (w1, b1, w2, b2, w3, b3, w4, b4, w5, b5, wf, bf) = params
    N, Cin, H, W = x_nchw.shape
    Co = w1.shape[0]                      # PyTorch OIHW layout
    Cf = wf.shape[0]
    HW = H * W
    f32 = jnp.float32
    bf16 = jnp.bfloat16

    # ---- fold every branch into its chunk of the fusion 1x1 conv (f32) ------
    wf2d = jnp.transpose(wf[:, :, 0, 0]).astype(f32)               # (5*Co, Cf)
    wfc = [wf2d[i * Co:(i + 1) * Co] for i in range(5)]            # per-branch

    w1_fold = jnp.transpose(w1[:, :, 0, 0]).astype(f32) @ wfc[0]   # (Cin, Cf)
    w2_fold = jnp.transpose(w2[:, :, 0, 0]).astype(f32) @ wfc[1]   # (Cin, Cf)
    w3_fold = jnp.einsum('oikl,of->klif', w3.astype(f32), wfc[2])  # (3,3,Cin,Cf)
    w4_fold = jnp.einsum('oikl,of->klif', w4.astype(f32), wfc[3])
    w5_fold = jnp.einsum('oikl,of->klif', w5.astype(f32), wfc[4])

    bias_row = (bf.astype(f32)
                + b1.astype(f32) @ wfc[0] + b2.astype(f32) @ wfc[1]
                + b3.astype(f32) @ wfc[2] + b4.astype(f32) @ wfc[3]
                + b5.astype(f32) @ wfc[4]).reshape(1, Cf)

    # ---- global-avg-pool branch precomputed per batch, entirely in f32 ------
    pooled = jnp.mean(x_nchw.astype(f32), axis=(2, 3))             # (N, Cin)
    rows = (pooled @ w1_fold + bias_row).reshape(N, 1, Cf)         # (N, 1, Cf)

    # ---- lane-dense bf16 im2col: 25 distinct shifted windows ----------------
    offsets = [(0, 0)]
    w_chunks = [w2_fold + w3_fold[1, 1] + w4_fold[1, 1] + w5_fold[1, 1]]
    for w_fold, d in ((w3_fold, 6), (w4_fold, 12), (w5_fold, 18)):
        for ki in range(3):
            for kj in range(3):
                if ki == 1 and kj == 1:
                    continue                      # shared unshifted tap above
                offsets.append(((ki - 1) * d, (kj - 1) * d))
                w_chunks.append(w_fold[ki, kj])
    w_big = jnp.concatenate(w_chunks, axis=0)                      # (25*Cin, Cf)

    # Build the slab in bf16 so the XLA-side write and the kernel-side read of
    # the ~25x expanded tensor move half the HBM bytes.
    x_nhwc = jnp.transpose(x_nchw, (0, 2, 3, 1)).astype(bf16)
    x_pad = jnp.pad(x_nhwc, ((0, 0), (PAD, PAD), (PAD, PAD), (0, 0)))
    cols = [x_pad[:, PAD + dy:PAD + dy + H, PAD + dx:PAD + dx + W, :]
            for (dy, dx) in offsets]
    x_col = jnp.concatenate(cols, axis=-1).reshape(N, HW, -1)      # (N, HW, K)

    # ---- tiling: HW and K grid tiles (zeros pads are inert) -----------------
    K = w_big.shape[0]
    HW_t = min(HW_T_TARGET, _round_up(HW, 8))
    K_t = min(K_T_TARGET, _round_up(K, 128))
    HW_p = _round_up(HW, HW_t)
    K_p = _round_up(K, K_t)

    if K_p != K:
        w_big = jnp.pad(w_big, ((0, K_p - K), (0, 0)))
    if K_p != K or HW_p != HW:
        x_col = jnp.pad(x_col, ((0, 0), (0, HW_p - HW), (0, K_p - K)))

    w_big = w_big.astype(bf16)     # bf16 MXU operands, f32 accumulation

    n_hw, n_k = HW_p // HW_t, K_p // K_t

    grid_spec = pltpu.PrefetchScalarGridSpec(
        num_scalar_prefetch=0,
        grid=(N, n_hw, n_k),                                 # reduction axis last
        in_specs=[
            pl.BlockSpec((None, HW_t, K_t), lambda n, h, k: (n, h, k)),
            pl.BlockSpec((K_t, Cf), lambda n, h, k: (k, 0)),
            pl.BlockSpec((None, 1, Cf), lambda n, h, k: (n, 0, 0)),
        ],
        out_specs=pl.BlockSpec((None, HW_t, Cf), lambda n, h, k: (n, h, 0)),
        scratch_shapes=[pltpu.VMEM((HW_t, Cf), jnp.float32)],
    )

    out_flat = pl.pallas_call(
        aspp_kernel,
        out_shape=jax.ShapeDtypeStruct((N, HW_p, Cf), bf16),  # bf16 lane-dense store
        grid_spec=grid_spec,
        compiler_params=pltpu.CompilerParams(
            dimension_semantics=("parallel", "parallel", "arbitrary")),
    )(x_col, w_big, rows)

    out = out_flat[:, :HW, :].reshape(N, H, W, Cf)
    return jnp.transpose(out, (0, 3, 1, 2)).astype(f32)       # NCHW, f32


# ----------------------------- pure-JAX reference -----------------------------
def _conv_ref(x, w, b, dil=1, pad=0):
    y = lax.conv_general_dilated(
        x, w, window_strides=(1, 1), padding=((pad, pad), (pad, pad)),
        rhs_dilation=(dil, dil),
        dimension_numbers=('NCHW', 'OIHW', 'NCHW'),
        precision=lax.Precision.HIGHEST)
    return y + b[None, :, None, None]


def aspp_ref(x, params):
    (w1, b1, w2, b2, w3, b3, w4, b4, w5, b5, wf, bf) = params
    N, Cin, H, W = x.shape
    pooled = jnp.mean(x, axis=(2, 3), keepdims=True)
    x1 = _conv_ref(pooled, w1, b1)
    x1 = jnp.broadcast_to(x1, (N, w1.shape[0], H, W))   # bilinear 1x1->HxW (const)
    x2 = _conv_ref(x, w2, b2)
    x3 = _conv_ref(x, w3, b3, dil=6, pad=6)
    x4 = _conv_ref(x, w4, b4, dil=12, pad=12)
    x5 = _conv_ref(x, w5, b5, dil=18, pad=18)
    cat = jnp.concatenate([x1, x2, x3, x4, x5], axis=1)
    return _conv_ref(cat, wf, bf)


if __name__ == "__main__":
    # Small shapes: the module's forward hard-codes the final conv as
    # Conv2d(5*256, 256), so out_channels must be 256; in_channels kept small.
    N, Cin, H, W = 2, 8, 16, 16
    Co, Cf = 256, 256

    key = jax.random.PRNGKey(0)
    ks = jax.random.split(key, 16)

    def wgen(k, shape, fan_in):
        return (jax.random.normal(k, shape, jnp.float32)
                / np.sqrt(float(fan_in))).astype(jnp.float32)

    w1 = wgen(ks[0], (Co, Cin, 1, 1), Cin);      b1 = wgen(ks[1], (Co,), Cin)
    w2 = wgen(ks[2], (Co, Cin, 1, 1), Cin);      b2 = wgen(ks[3], (Co,), Cin)
    w3 = wgen(ks[4], (Co, Cin, 3, 3), Cin * 9);  b3 = wgen(ks[5], (Co,), Cin * 9)
    w4 = wgen(ks[6], (Co, Cin, 3, 3), Cin * 9);  b4 = wgen(ks[7], (Co,), Cin * 9)
    w5 = wgen(ks[8], (Co, Cin, 3, 3), Cin * 9);  b5 = wgen(ks[9], (Co,), Cin * 9)
    # Final fusion conv (fresh/random in PyTorch forward; deterministic here).
    wf = wgen(ks[10], (Cf, 5 * Co, 1, 1), 5 * Co)
    bf = wgen(ks[11], (Cf,), 5 * Co)
    params = (w1, b1, w2, b2, w3, b3, w4, b4, w5, b5, wf, bf)

    x = jax.random.normal(ks[12], (N, Cin, H, W), jnp.float32)

    out = jax.block_until_ready(jax.jit(aspp_pallas)(x, params))
    ref = jax.block_until_ready(aspp_ref(x, params))
    assert out.shape == (N, Cf, H, W)
    np.testing.assert_allclose(np.asarray(out), np.asarray(ref),
                               rtol=2e-2, atol=2e-2)
    print("KERNEL_OK")
</pallas_src>

<mosaic_0001>
module attributes {stable_mosaic.version = 11 : i64} {
  func.func @aspp_kernel(%arg0: i32, %arg1: i32, %arg2: i32, %arg3: memref<1x256x256xbf16, #tpu.memory_space<vmem>>, %arg4: memref<256x256xbf16, #tpu.memory_space<vmem>>, %arg5: memref<1x1x256xf32, #tpu.memory_space<vmem>>, %arg6: memref<1x256x256xbf16, #tpu.memory_space<vmem>>, %arg7: memref<256x256xf32, #tpu.memory_space<vmem>>) attributes {dimension_semantics = [#tpu.dimension_semantics<parallel>, #tpu.dimension_semantics<parallel>, #tpu.dimension_semantics<arbitrary>], iteration_bounds = array<i64: 2, 1, 1>, scalar_prefetch = 0 : i64, scratch_operands = 1 : i64, tpu.core_type = #tpu.core_type<tc>, window_params = [{transform_indices = @transform_0, window_bounds = array<i64: 1, 256, 256>}, {transform_indices = @transform_1, window_bounds = array<i64: 256, 256>}, {transform_indices = @transform_2, window_bounds = array<i64: 1, 1, 256>}, {transform_indices = @transform_3, window_bounds = array<i64: 1, 256, 256>}]} {
    %c0_i32 = arith.constant 0 : i32
    %0 = arith.cmpi eq, %arg2, %c0_i32 : i32
    %1 = arith.extui %0 : i1 to i32
    %c0_i32_0 = arith.constant 0 : i32
    %2 = arith.cmpi ne, %1, %c0_i32_0 : i32
    scf.if %2 {
      %c0_11 = arith.constant 0 : index
      %c0_12 = arith.constant 0 : index
      %c0_13 = arith.constant 0 : index
      %13 = vector.load %arg5[%c0_11, %c0_12, %c0_13] : memref<1x1x256xf32, #tpu.memory_space<vmem>>, vector<1x1x256xf32>
      %14 = vector.shape_cast %13 : vector<1x1x256xf32> to vector<1x256xf32>
      %15 = vector.shape_cast %14 : vector<1x256xf32> to vector<1x256xf32>
      %16 = vector.broadcast %15 : vector<1x256xf32> to vector<256x256xf32>
      %c0_14 = arith.constant 0 : index
      %c0_15 = arith.constant 0 : index
      %17 = vector.load %arg7[%c0_14, %c0_15] : memref<256x256xf32, #tpu.memory_space<vmem>>, vector<256x256xf32>
      tpu.vector_store %arg7[%c0_14, %c0_15], %16 {strides = array<i32>} : memref<256x256xf32, #tpu.memory_space<vmem>>, vector<256x256xf32>,
    } else {
    }
    %c0 = arith.constant 0 : index
    %c0_1 = arith.constant 0 : index
    %3 = vector.load %arg7[%c0, %c0_1] : memref<256x256xf32, #tpu.memory_space<vmem>>, vector<256x256xf32>
    %c0_2 = arith.constant 0 : index
    %c0_3 = arith.constant 0 : index
    %c0_4 = arith.constant 0 : index
    %4 = vector.load %arg3[%c0_2, %c0_3, %c0_4] : memref<1x256x256xbf16, #tpu.memory_space<vmem>>, vector<1x256x256xbf16>
    %5 = vector.shape_cast %4 : vector<1x256x256xbf16> to vector<256x256xbf16>
    %c0_5 = arith.constant 0 : index
    %c0_6 = arith.constant 0 : index
    %6 = vector.load %arg4[%c0_5, %c0_6] : memref<256x256xbf16, #tpu.memory_space<vmem>>, vector<256x256xbf16>
    %cst = arith.constant dense<0.000000e+00> : vector<256x256xf32>
    %7 = tpu.matmul %5, %6, %cst {dimension_numbers = #tpu.dot_dimension_numbers<[1], [0], [0], [1], [0, 0, 1, 1], [], []>} : vector<256x256xbf16>, vector<256x256xbf16>, vector<256x256xf32> -> vector<256x256xf32>
    %8 = arith.addf %3, %7 : vector<256x256xf32>
    %c0_7 = arith.constant 0 : index
    %c0_8 = arith.constant 0 : index
    %9 = vector.load %arg7[%c0_7, %c0_8] : memref<256x256xf32, #tpu.memory_space<vmem>>, vector<256x256xf32>
    tpu.vector_store %arg7[%c0_7, %c0_8], %8 {strides = array<i32>} : memref<256x256xf32, #tpu.memory_space<vmem>>, vector<256x256xf32>,
    %c0_i32_9 = arith.constant 0 : i32
    %10 = arith.cmpi eq, %arg2, %c0_i32_9 : i32
    %11 = arith.extui %10 : i1 to i32
    %c0_i32_10 = arith.constant 0 : i32
    %12 = arith.cmpi ne, %11, %c0_i32_10 : i32
    scf.if %12 {
      %c0_11 = arith.constant 0 : index
      %c0_12 = arith.constant 0 : index
      %13 = vector.load %arg7[%c0_11, %c0_12] : memref<256x256xf32, #tpu.memory_space<vmem>>, vector<256x256xf32>
      %14 = arith.truncf %13 : vector<256x256xf32> to vector<256x256xbf16>
      %c0_13 = arith.constant 0 : index
      %c0_14 = arith.constant 0 : index
      %c0_15 = arith.constant 0 : index
      %15 = vector.load %arg6[%c0_13, %c0_14, %c0_15] : memref<1x256x256xbf16, #tpu.memory_space<vmem>>, vector<1x256x256xbf16>
      %16 = vector.shape_cast %15 : vector<1x256x256xbf16> to vector<256x256xbf16>
      %17 = vector.shape_cast %14 : vector<256x256xbf16> to vector<1x256x256xbf16>
      tpu.vector_store %arg6[%c0_13, %c0_14, %c0_15], %17 {strides = array<i32>} : memref<1x256x256xbf16, #tpu.memory_space<vmem>>, vector<1x256x256xbf16>,
    } else {
    }
    return
  }
  func.func @transform_0(%arg0: i32, %arg1: i32, %arg2: i32) -> (i32, i32, i32) {
    %c0_i32 = arith.constant 0 : i32
    return %arg0, %arg1, %arg2 : i32, i32, i32
  }
  func.func @transform_1(%arg0: i32, %arg1: i32, %arg2: i32) -> (i32, i32) {
    %c0_i32 = arith.constant 0 : i32
    %c0_i32_0 = arith.constant 0 : i32
    return %arg2, %c0_i32 : i32, i32
  }
  func.func @transform_2(%arg0: i32, %arg1: i32, %arg2: i32) -> (i32, i32, i32) {
    %c0_i32 = arith.constant 0 : i32
    %c0_i32_0 = arith.constant 0 : i32
    %c0_i32_1 = arith.constant 0 : i32
    return %arg0, %c0_i32, %c0_i32_0 : i32, i32, i32
  }
  func.func @transform_3(%arg0: i32, %arg1: i32, %arg2: i32) -> (i32, i32, i32) {
    %c0_i32 = arith.constant 0 : i32
    %c0_i32_0 = arith.constant 0 : i32
    return %arg0, %arg1, %c0_i32 : i32, i32, i32
  }
}

</mosaic_0001>

<llo_original>
// kernel: aspp_pallas.1
$region0: #{aspp_pallas.1}
  #allocation0 [shape = 'u32[]', space=smem, size = 0x4, offset = 0x4, fixed_abs, tag = 'smem constant byte address 0x4 - core index']
  #allocation1 [shape = 'u32[72,128]{1,0:T(1,128)}', space=vmem, size = 0x9000, scoped, tag = 'internal scratch']
  #allocation2 [shape = 'f32[256,256]{1,0:T(8,128)}', space=vmem, size = 0x40000, scoped, tag = 'scratch operand']
  %s0 = inlined_call_operand.vmem [shape: bf16[2,256,256], index: 0, kind: input, shape index: {}]
  %s1 = inlined_call_operand.vmem [shape: bf16[256,256], index: 1, kind: input, shape index: {}]
  %s2 = inlined_call_operand.vmem [shape: f32[2,1,256], index: 2, kind: input, shape index: {}]
  %s3 = inlined_call_operand.vmem [shape: bf16[2,256,256], index: 3, kind: output, shape index: {}]
  %s4 = sld [smem:[#allocation0]]
  $region53: #{aspp_pallas.1} parent=0
    _
  %s6 = ssub.s32 1, %s4
  %s7 = scalar_select 0, %s6, %s4
  loop: start=0, step=1, limit=4
  $region2: #{aspp_pallas.1} parent=0 // loop_pre_header
    _
  $region3: #{aspp_pallas.1} parent=0 // loop_header
    %s9 = sphi 0, %s13
    %p10 = scmp.ge.s32.totalorder %s9, 4
    %s16 = sphi 0, %s35
    %s17 = sphi 0, %s31
    %s18 = sphi 0, %s27
    %s19 = sphi 0, %s16
    %s20 = sphi 0, %s17
    %s21 = sphi 0, %s18
    %s22 = sphi 0, %s19
    %s23 = sphi 0, %s20
    %s24 = sphi 0, %s21
    %s42 = sphi 0, %s44
    %s45 = sphi 0, %s42
    %s46 = sphi 0, %s45
    %s62 = sphi 0, %s46
    %s68 = sphi 0, %s70
    %s71 = sphi 0, %s68
    %s72 = sphi 0, %s71
    %s88 = sphi 0, %s72
    %s94 = sphi 0, %s96
    %s97 = sphi 0, %s94
    %s98 = sphi 0, %s97
    %s114 = sphi 0, %s98
    %s122 = sphi 0, %s124
    %s125 = sphi 0, %s122
    %s126 = sphi 0, %s125
    %s142 = sphi 0, %s126
  $region4: #{aspp_pallas.1} parent=0 // loop_header_branch
    %12 = sbr.rel (%p10) target = $region8
  $region5: #{aspp_pallas.1} parent=0 // loop_body
    %s14 = ssub.s32 %s9, 1
    %s15 = ssub.s32 %s9, 2
    %s25 = sadd.s32 1, %s18
    %p26 = scmp.ge.s32.totalorder %s25, 1
    %s27 = scalar_select %p26, 0, %s25
    %s28 = sadd.s32 1, %s17
    %s29 = scalar_select %p26, %s28, %s17
    %p30 = scmp.ge.s32.totalorder %s29, 1
    %s31 = scalar_select %p30, 0, %s29
    %s32 = sadd.s32 1, %s16
    %s33 = scalar_select %p30, %s32, %s16
    %p34 = scmp.ge.s32.totalorder %s33, 2
    %s35 = scalar_select %p34, 0, %s33
    %s36 = ssub.s32 %s16, %s35
    %s37 = ssub.s32 %s17, %s31
    %s38 = sor.u32 %s36, %s37
    %s39 = ssub.s32 %s18, %s27
    %s40 = sor.u32 %s38, %s39
    %p41 = scmp.eq.s32.totalorder %s40, 0
    %s43 = sadd.s32 %s42, 1
    %s44 = scalar_select %p41, %s42, %s43
    %p47 = pneg %p41
    %p48 = scmp.eq.s32.totalorder %s9, 1
    %p49 = por %p47, %p48
    %p50 = scmp.ne.s32.totalorder %s42, %s45
    %p51 = scmp.eq.s32.totalorder %s9, 0
    %p52 = por %p50, %p51
    %p53 = scmp.ne.s32.totalorder %s42, %s45
    %p54 = scmp.eq.s32.totalorder %s14, 1
    %p55 = por %p53, %p54
    %p56 = scmp.ne.s32.totalorder %s45, %s46
    %p57 = scmp.eq.s32.totalorder %s14, 0
    %p58 = por %p56, %p57
    %p59 = scmp.ne.s32.totalorder %s45, %s46
    %p60 = scmp.eq.s32.totalorder %s15, 1
    %p61 = por %p59, %p60
    %p63 = scmp.ne.s32.totalorder %s46, %s62
    %p64 = scmp.eq.s32.totalorder %s15, 0
    %p65 = por %p63, %p64
    %s66 = ssub.s32 %s18, %s27
    %p67 = scmp.eq.s32.totalorder %s66, 0
    %s69 = sadd.s32 %s68, 1
    %s70 = scalar_select %p67, %s68, %s69
    %p73 = pneg %p67
    %p74 = scmp.eq.s32.totalorder %s9, 1
    %p75 = por %p73, %p74
    %p76 = scmp.ne.s32.totalorder %s68, %s71
    %p77 = scmp.eq.s32.totalorder %s9, 0
    %p78 = por %p76, %p77
    %p79 = scmp.ne.s32.totalorder %s68, %s71
    %p80 = scmp.eq.s32.totalorder %s14, 1
    %p81 = por %p79, %p80
    %p82 = scmp.ne.s32.totalorder %s71, %s72
    %p83 = scmp.eq.s32.totalorder %s14, 0
    %p84 = por %p82, %p83
    %p85 = scmp.ne.s32.totalorder %s71, %s72
    %p86 = scmp.eq.s32.totalorder %s15, 1
    %p87 = por %p85, %p86
    %p89 = scmp.ne.s32.totalorder %s72, %s88
    %p90 = scmp.eq.s32.totalorder %s15, 0
    %p91 = por %p89, %p90
    %s92 = ssub.s32 %s16, %s35
    %p93 = scmp.eq.s32.totalorder %s92, 0
    %s95 = sadd.s32 %s94, 1
    %s96 = scalar_select %p93, %s94, %s95
    %p99 = pneg %p93
    %p100 = scmp.eq.s32.totalorder %s9, 1
    %p101 = por %p99, %p100
    %p102 = scmp.ne.s32.totalorder %s94, %s97
    %p103 = scmp.eq.s32.totalorder %s9, 0
    %p104 = por %p102, %p103
    %p105 = scmp.ne.s32.totalorder %s94, %s97
    %p106 = scmp.eq.s32.totalorder %s14, 1
    %p107 = por %p105, %p106
    %p108 = scmp.ne.s32.totalorder %s97, %s98
    %p109 = scmp.eq.s32.totalorder %s14, 0
    %p110 = por %p108, %p109
    %p111 = scmp.ne.s32.totalorder %s97, %s98
    %p112 = scmp.eq.s32.totalorder %s15, 1
    %p113 = por %p111, %p112
    %p115 = scmp.ne.s32.totalorder %s98, %s114
    %p116 = scmp.eq.s32.totalorder %s15, 0
    %p117 = por %p115, %p116
    %s118 = ssub.s32 %s16, %s35
    %s119 = ssub.s32 %s17, %s31
    %s120 = sor.u32 %s118, %s119
    %p121 = scmp.eq.s32.totalorder %s120, 0
    %s123 = sadd.s32 %s122, 1
    %s124 = scalar_select %p121, %s122, %s123
    %p127 = pneg %p121
    %p128 = scmp.eq.s32.totalorder %s9, 1
    %p129 = por %p127, %p128
    %p130 = scmp.ne.s32.totalorder %s122, %s125
    %p131 = scmp.eq.s32.totalorder %s9, 0
    %p132 = por %p130, %p131
    %p133 = scmp.ne.s32.totalorder %s122, %s125
    %p134 = scmp.eq.s32.totalorder %s14, 1
    %p135 = por %p133, %p134
    %p136 = scmp.ne.s32.totalorder %s125, %s126
    %p137 = scmp.eq.s32.totalorder %s14, 0
    %p138 = por %p136, %p137
    %p139 = scmp.ne.s32.totalorder %s125, %s126
    %p140 = scmp.eq.s32.totalorder %s15, 1
    %p141 = por %p139, %p140
    %p143 = scmp.ne.s32.totalorder %s126, %s142
    %p144 = scmp.eq.s32.totalorder %s15, 0
    %p145 = por %p143, %p144
    %p146 = scmp.le.s32.totalorder 1, %s9
    %p147 = scmp.lt.s32.totalorder %s9, 3
    %p148 = pnand %p146, %p147
    %p149 = pneg %p148
    // Predicated region
    $region9: #{aspp_pallas.1} parent=5 // pred_check
      _
    $region10: #{aspp_pallas.1} parent=5 // pred_check_branch
      %151 = sbr.rel (%p148) target = $region12
    $region11: #{aspp_pallas.1} parent=5 // pred_region
      %s152 = ssub.s32 %s9, 1
      // Predicated region
      $region13: #{aspp_pallas.1} parent=11 // pred_check
        %p153 = pneg %p84
      $region14: #{aspp_pallas.1} parent=11 // pred_check_branch
        %155 = sbr.rel (%p153) target = $region16
      $region15: #{aspp_pallas.1} parent=11 // pred_region
        %s156 = smul.u32 32, %s21
        %p157 = scmp.lt.s32.totalorder %s156, 31
        %s158 = scalar_select %p157, %s156, 31
        %s159 = smul.addr %s158, 2
        %s160 = smul.addr %s159, 4
        %s161 = scalar_lea.vmem %s1, %s160
        %s162 = smul.u32 32, %s21
      $region16: #{aspp_pallas.1} parent=11 // pred_fallthru
        _
    $region12: #{aspp_pallas.1} parent=5 // pred_fallthru
      _
    %p163 = scmp.lt.s32.totalorder %s9, 2
    // Predicated region
    $region17: #{aspp_pallas.1} parent=5 // pred_check
      %p164 = pneg %p163
    $region18: #{aspp_pallas.1} parent=5 // pred_check_branch
      %166 = sbr.rel (%p164) target = $region20
    $region19: #{aspp_pallas.1} parent=5 // pred_region
      // Predicated region
      $region21: #{aspp_pallas.1} parent=19 // pred_check
        %p167 = pneg %p52
      $region22: #{aspp_pallas.1} parent=19 // pred_check_branch
        %169 = sbr.rel (%p167) target = $region24
      $region23: #{aspp_pallas.1} parent=19 // pred_region
        %s170 = smul.u32 32, %s17
        %s171 = smul.u32 2, %s18
        %p172 = scmp.lt.s32.totalorder %s16, 1
        %s173 = scalar_select %p172, %s16, 1
        %p174 = scmp.lt.s32.totalorder %s170, 31
        %s175 = scalar_select %p174, %s170, 31
        %p176 = scmp.lt.s32.totalorder %s171, 1
        %s177 = scalar_select %p176, %s171, 1
        %s178 = smul.addr %s175, 2
        %s179 = sadd.s32 %s177, %s178
        %s180 = smul.addr %s173, 64
        %s181 = sadd.s32 %s179, %s180
        %s182 = smul.addr %s181, 4
        %s183 = scalar_lea.vmem %s0, %s182
        %s184 = smul.u32 32, %s17
        %s185 = smul.u32 2, %s18
      $region24: #{aspp_pallas.1} parent=19 // pred_fallthru
        _
      // Predicated region
      $region25: #{aspp_pallas.1} parent=19 // pred_check
        %p186 = pneg %p104
      $region26: #{aspp_pallas.1} parent=19 // pred_check_branch
        %188 = sbr.rel (%p186) target = $region28
      $region27: #{aspp_pallas.1} parent=19 // pred_region
        %p189 = scmp.lt.s32.totalorder %s16, 1
        %s190 = scalar_select %p189, %s16, 1
        %s191 = smul.addr %s190, 2
        %s192 = scalar_lea.vmem %s2, %s191
      $region28: #{aspp_pallas.1} parent=19 // pred_fallthru
        _
    $region20: #{aspp_pallas.1} parent=5 // pred_fallthru
      _
    %p193 = scmp.le.s32.totalorder 1, %s9
    %p194 = scmp.lt.s32.totalorder %s9, 3
    %p195 = pnand %p193, %p194
    %p196 = pneg %p195
    // Predicated region
    $region29: #{aspp_pallas.1} parent=5 // pred_check
      _
    $region30: #{aspp_pallas.1} parent=5 // pred_check_branch
      %198 = sbr.rel (%p195) target = $region32
    $region31: #{aspp_pallas.1} parent=5 // pred_region
      %s199 = ssub.s32 %s9, 1
      %s200 = smul.u32 32, %s20
      %s201 = smul.u32 2, %s21
      %p202 = scmp.lt.s32.totalorder %s19, 1
      %s203 = scalar_select %p202, %s19, 1
      %p204 = scmp.lt.s32.totalorder %s200, 31
      %s205 = scalar_select %p204, %s200, 31
      %p206 = scmp.lt.s32.totalorder %s201, 1
      %s207 = scalar_select %p206, %s201, 1
      %s208 = smul.addr %s205, 2
      %s209 = sadd.s32 %s207, %s208
      %s210 = smul.addr %s203, 64
      %s211 = sadd.s32 %s209, %s210
      %s212 = smul.addr %s211, 4
      %s213 = scalar_lea.vmem %s0, %s212
      %p214 = pneg %p58
      %p215 = pneg %p55
      %s216 = smul.u32 32, %s21
      %p217 = scmp.lt.s32.totalorder %s216, 31
      %s218 = scalar_select %p217, %s216, 31
      %s219 = smul.addr %s218, 2
      %s220 = smul.addr %s219, 4
      %s221 = scalar_lea.vmem %s1, %s220
      %p222 = pneg %p84
      %p223 = pneg %p81
      %p224 = scmp.lt.s32.totalorder %s19, 1
      %s225 = scalar_select %p224, %s19, 1
      %s226 = smul.addr %s225, 2
      %s227 = scalar_lea.vmem %s2, %s226
      %p228 = pneg %p110
      %p229 = pneg %p107
      %p230 = pneg %p138
      %p231 = pneg %p135
      %s232 = smul.u32 32, %s20
      %p233 = scmp.lt.s32.totalorder %s19, 1
      %s234 = scalar_select %p233, %s19, 1
      %p235 = scmp.lt.s32.totalorder %s232, 31
      %s236 = scalar_select %p235, %s232, 31
      %s237 = smul.addr %s236, 2
      %s238 = smul.addr %s234, 64
      %s239 = sadd.s32 %s237, %s238
      %s240 = smul.addr %s239, 4
      %s241 = scalar_lea.vmem %s3, %s240
      %s242 = smul.u32 32, %s20
      %s243 = smul.u32 2, %s21
      %p244 = scmp.lt.s32.totalorder %s19, 1
      %s245 = scalar_select %p244, %s19, 1
      %p246 = scmp.lt.s32.totalorder %s242, 31
      %s247 = scalar_select %p246, %s242, 31
      %p248 = scmp.lt.s32.totalorder %s243, 1
      %s249 = scalar_select %p248, %s243, 1
      %s250 = smul.addr %s247, 2
      %s251 = sadd.s32 %s249, %s250
      %s252 = smul.addr %s245, 64
      %s253 = sadd.s32 %s251, %s252
      %s254 = smul.addr %s253, 4
      %s255 = scalar_lea.vmem %s0, %s254
      %s256 = smul.u32 32, %s20
      %s257 = smul.u32 2, %s21
      %s258 = smul.u32 32, %s21
      %p259 = scmp.lt.s32.totalorder %s258, 31
      %s260 = scalar_select %p259, %s258, 31
      %s261 = smul.addr %s260, 2
      %s262 = smul.addr %s261, 4
      %s263 = scalar_lea.vmem %s1, %s262
      %s264 = smul.u32 32, %s21
      %p265 = scmp.lt.s32.totalorder %s19, 1
      %s266 = scalar_select %p265, %s19, 1
      %s267 = smul.addr %s266, 2
      %s268 = scalar_lea.vmem %s2, %s267
      %s269 = smul.u32 32, %s20
      %p270 = scmp.lt.s32.totalorder %s19, 1
      %s271 = scalar_select %p270, %s19, 1
      %p272 = scmp.lt.s32.totalorder %s269, 31
      %s273 = scalar_select %p272, %s269, 31
      %s274 = smul.addr %s273, 2
      %s275 = smul.addr %s271, 64
      %s276 = sadd.s32 %s274, %s275
      %s277 = smul.addr %s276, 4
      %s278 = scalar_lea.vmem %s3, %s277
      %s279 = smul.u32 32, %s20
      %p280 = scmp.eq.s32.totalorder %s21, 0
      // Predicated region
      $region33: #{aspp_pallas.1} parent=31 // pred_check
        %p281 = pneg %p280
      $region34: #{aspp_pallas.1} parent=31 // pred_check_branch
        %283 = sbr.rel (%p281) target = $region36
      $region35: #{aspp_pallas.1} parent=31 // pred_region
        %v284 = vld [vmem:[%s268] sm:$0x3]
        %v286 = vperm.slane %v284, 0
        %v287 = vperm.slane %v284, 1
        %290 = vst [vmem:[#allocation2] sm:$0xff] %v286
        %291 = vst [vmem:[#allocation2 + $0x8] sm:$0xff] %v287
        %292 = vst [vmem:[#allocation2 + $0x10] sm:$0xff] %v286
        %293 = vst [vmem:[#allocation2 + $0x18] sm:$0xff] %v287
        %294 = vst [vmem:[#allocation2 + $0x20] sm:$0xff] %v286
        %295 = vst [vmem:[#allocation2 + $0x28] sm:$0xff] %v287
        %296 = vst [vmem:[#allocation2 + $0x30] sm:$0xff] %v286
        %297 = vst [vmem:[#allocation2 + $0x38] sm:$0xff] %v287
        %298 = vst [vmem:[#allocation2 + $0x40] sm:$0xff] %v286
        %299 = vst [vmem:[#allocation2 + $0x48] sm:$0xff] %v287
        %300 = vst [vmem:[#allocation2 + $0x50] sm:$0xff] %v286
        %301 = vst [vmem:[#allocation2 + $0x58] sm:$0xff] %v287
        %302 = vst [vmem:[#allocation2 + $0x60] sm:$0xff] %v286
        %303 = vst [vmem:[#allocation2 + $0x68] sm:$0xff] %v287
        %304 = vst [vmem:[#allocation2 + $0x70] sm:$0xff] %v286
        %305 = vst [vmem:[#allocation2 + $0x78] sm:$0xff] %v287
        %306 = vst [vmem:[#allocation2 + $0x80] sm:$0xff] %v286
        %307 = vst [vmem:[#allocation2 + $0x88] sm:$0xff] %v287
        %308 = vst [vmem:[#allocation2 + $0x90] sm:$0xff] %v286
        %309 = vst [vmem:[#allocation2 + $0x98] sm:$0xff] %v287
        %310 = vst [vmem:[#allocation2 + $0xa0] sm:$0xff] %v286
        %311 = vst [vmem:[#allocation2 + $0xa8] sm:$0xff] %v287
        %312 = vst [vmem:[#allocation2 + $0xb0] sm:$0xff] %v286
        %313 = vst [vmem:[#allocation2 + $0xb8] sm:$0xff] %v287
        %314 = vst [vmem:[#allocation2 + $0xc0] sm:$0xff] %v286
        %315 = vst [vmem:[#allocation2 + $0xc8] sm:$0xff] %v287
        %316 = vst [vmem:[#allocation2 + $0xd0] sm:$0xff] %v286
        %317 = vst [vmem:[#allocation2 + $0xd8] sm:$0xff] %v287
        %318 = vst [vmem:[#allocation2 + $0xe0] sm:$0xff] %v286
        %319 = vst [vmem:[#allocation2 + $0xe8] sm:$0xff] %v287
        %320 = vst [vmem:[#allocation2 + $0xf0] sm:$0xff] %v286
        %321 = vst [vmem:[#allocation2 + $0xf8] sm:$0xff] %v287
        %322 = vst [vmem:[#allocation2 + $0x100] sm:$0xff] %v286
        %323 = vst [vmem:[#allocation2 + $0x108] sm:$0xff] %v287
        %324 = vst [vmem:[#allocation2 + $0x110] sm:$0xff] %v286
        %325 = vst [vmem:[#allocation2 + $0x118] sm:$0xff] %v287
        %326 = vst [vmem:[#allocation2 + $0x120] sm:$0xff] %v286
        %327 = vst [vmem:[#allocation2 + $0x128] sm:$0xff] %v287
        %328 = vst [vmem:[#allocation2 + $0x130] sm:$0xff] %v286
        %329 = vst [vmem:[#allocation2 + $0x138] sm:$0xff] %v287
        %330 = vst [vmem:[#allocation2 + $0x140] sm:$0xff] %v286
        %331 = vst [vmem:[#allocation2 + $0x148] sm:$0xff] %v287
        %332 = vst [vmem:[#allocation2 + $0x150] sm:$0xff] %v286
        %333 = vst [vmem:[#allocation2 + $0x158] sm:$0xff] %v287
        %334 = vst [vmem:[#allocation2 + $0x160] sm:$0xff] %v286
        %335 = vst [vmem:[#allocation2 + $0x168] sm:$0xff] %v287
        %336 = vst [vmem:[#allocation2 + $0x170] sm:$0xff] %v286
        %337 = vst [vmem:[#allocation2 + $0x178] sm:$0xff] %v287
        %338 = vst [vmem:[#allocation2 + $0x180] sm:$0xff] %v286
        %339 = vst [vmem:[#allocation2 + $0x188] sm:$0xff] %v287
        %340 = vst [vmem:[#allocation2 + $0x190] sm:$0xff] %v286
        %341 = vst [vmem:[#allocation2 + $0x198] sm:$0xff] %v287
        %342 = vst [vmem:[#allocation2 + $0x1a0] sm:$0xff] %v286
        %343 = vst [vmem:[#allocation2 + $0x1a8] sm:$0xff] %v287
        %344 = vst [vmem:[#allocation2 + $0x1b0] sm:$0xff] %v286
        %345 = vst [vmem:[#allocation2 + $0x1b8] sm:$0xff] %v287
        %346 = vst [vmem:[#allocation2 + $0x1c0] sm:$0xff] %v286
        %347 = vst [vmem:[#allocation2 + $0x1c8] sm:$0xff] %v287
        %348 = vst [vmem:[#allocation2 + $0x1d0] sm:$0xff] %v286
        %349 = vst [vmem:[#allocation2 + $0x1d8] sm:$0xff] %v287
        %350 = vst [vmem:[#allocation2 + $0x1e0] sm:$0xff] %v286
        %351 = vst [vmem:[#allocation2 + $0x1e8] sm:$0xff] %v287
        %352 = vst [vmem:[#allocation2 + $0x1f0] sm:$0xff] %v286
        %353 = vst [vmem:[#allocation2 + $0x1f8] sm:$0xff] %v287
      $region36: #{aspp_pallas.1} parent=31 // pred_fallthru
        _
      %v354 = vld [vmem:[#allocation2] sm:$0xff]
      %v355 = vld [vmem:[#allocation2 + $0x8] sm:$0xff]
      %v356 = vld [vmem:[#allocation2 + $0x10] sm:$0xff]
      %v357 = vld [vmem:[#allocation2 + $0x18] sm:$0xff]
      %v358 = vld [vmem:[#allocation2 + $0x20] sm:$0xff]
      %v359 = vld [vmem:[#allocation2 + $0x28] sm:$0xff]
      %v360 = vld [vmem:[#allocation2 + $0x30] sm:$0xff]
      %v361 = vld [vmem:[#allocation2 + $0x38] sm:$0xff]
      %v362 = vld [vmem:[#allocation2 + $0x40] sm:$0xff]
      %v363 = vld [vmem:[#allocation2 + $0x48] sm:$0xff]
      %v364 = vld [vmem:[#allocation2 + $0x50] sm:$0xff]
      %v365 = vld [vmem:[#allocation2 + $0x58] sm:$0xff]
      %v366 = vld [vmem:[#allocation2 + $0x60] sm:$0xff]
      %v367 = vld [vmem:[#allocation2 + $0x68] sm:$0xff]
      %v368 = vld [vmem:[#allocation2 + $0x70] sm:$0xff]
      %v369 = vld [vmem:[#allocation2 + $0x78] sm:$0xff]
      %v370 = vld [vmem:[#allocation2 + $0x80] sm:$0xff]
      %v371 = vld [vmem:[#allocation2 + $0x88] sm:$0xff]
      %v372 = vld [vmem:[#allocation2 + $0x90] sm:$0xff]
      %v373 = vld [vmem:[#allocation2 + $0x98] sm:$0xff]
      %v374 = vld [vmem:[#allocation2 + $0xa0] sm:$0xff]
      %v375 = vld [vmem:[#allocation2 + $0xa8] sm:$0xff]
      %v376 = vld [vmem:[#allocation2 + $0xb0] sm:$0xff]
      %v377 = vld [vmem:[#allocation2 + $0xb8] sm:$0xff]
      %v378 = vld [vmem:[#allocation2 + $0xc0] sm:$0xff]
      %v379 = vld [vmem:[#allocation2 + $0xc8] sm:$0xff]
      %v380 = vld [vmem:[#allocation2 + $0xd0] sm:$0xff]
      %v381 = vld [vmem:[#allocation2 + $0xd8] sm:$0xff]
      %v382 = vld [vmem:[#allocation2 + $0xe0] sm:$0xff]
      %v383 = vld [vmem:[#allocation2 + $0xe8] sm:$0xff]
      %v384 = vld [vmem:[#allocation2 + $0xf0] sm:$0xff]
      %v385 = vld [vmem:[#allocation2 + $0xf8] sm:$0xff]
      %v386 = vld [vmem:[#allocation2 + $0x100] sm:$0xff]
      %v387 = vld [vmem:[#allocation2 + $0x108] sm:$0xff]
      %v388 = vld [vmem:[#allocation2 + $0x110] sm:$0xff]
      %v389 = vld [vmem:[#allocation2 + $0x118] sm:$0xff]
      %v390 = vld [vmem:[#allocation2 + $0x120] sm:$0xff]
      %v391 = vld [vmem:[#allocation2 + $0x128] sm:$0xff]
      %v392 = vld [vmem:[#allocation2 + $0x130] sm:$0xff]
      %v393 = vld [vmem:[#allocation2 + $0x138] sm:$0xff]
      %v394 = vld [vmem:[#allocation2 + $0x140] sm:$0xff]
      %v395 = vld [vmem:[#allocation2 + $0x148] sm:$0xff]
      %v396 = vld [vmem:[#allocation2 + $0x150] sm:$0xff]
      %v397 = vld [vmem:[#allocation2 + $0x158] sm:$0xff]
      %v398 = vld [vmem:[#allocation2 + $0x160] sm:$0xff]
      %v399 = vld [vmem:[#allocation2 + $0x168] sm:$0xff]
      %v400 = vld [vmem:[#allocation2 + $0x170] sm:$0xff]
      %v401 = vld [vmem:[#allocation2 + $0x178] sm:$0xff]
      %v402 = vld [vmem:[#allocation2 + $0x180] sm:$0xff]
      %v403 = vld [vmem:[#allocation2 + $0x188] sm:$0xff]
      %v404 = vld [vmem:[#allocation2 + $0x190] sm:$0xff]
      %v405 = vld [vmem:[#allocation2 + $0x198] sm:$0xff]
      %v406 = vld [vmem:[#allocation2 + $0x1a0] sm:$0xff]
      %v407 = vld [vmem:[#allocation2 + $0x1a8] sm:$0xff]
      %v408 = vld [vmem:[#allocation2 + $0x1b0] sm:$0xff]
      %v409 = vld [vmem:[#allocation2 + $0x1b8] sm:$0xff]
      %v410 = vld [vmem:[#allocation2 + $0x1c0] sm:$0xff]
      %v411 = vld [vmem:[#allocation2 + $0x1c8] sm:$0xff]
      %v412 = vld [vmem:[#allocation2 + $0x1d0] sm:$0xff]
      %v413 = vld [vmem:[#allocation2 + $0x1d8] sm:$0xff]
      %v414 = vld [vmem:[#allocation2 + $0x1e0] sm:$0xff]
      %v415 = vld [vmem:[#allocation2 + $0x1e8] sm:$0xff]
      %v416 = vld [vmem:[#allocation2 + $0x1f0] sm:$0xff]
      %v417 = vld [vmem:[#allocation2 + $0x1f8] sm:$0xff]
      %v418 = vld [vmem:[%s255] sm:$0xff]
      %v419 = vld [vmem:[%s255 + $0x8] sm:$0xff]
      %v420 = vld [vmem:[%s255 + $0x10] sm:$0xff]
      %v421 = vld [vmem:[%s255 + $0x18] sm:$0xff]
      %v422 = vld [vmem:[%s255 + $0x20] sm:$0xff]
      %v423 = vld [vmem:[%s255 + $0x28] sm:$0xff]
      %v424 = vld [vmem:[%s255 + $0x30] sm:$0xff]
      %v425 = vld [vmem:[%s255 + $0x38] sm:$0xff]
      %v426 = vld [vmem:[%s255 + $0x40] sm:$0xff]
      %v427 = vld [vmem:[%s255 + $0x48] sm:$0xff]
      %v428 = vld [vmem:[%s255 + $0x50] sm:$0xff]
      %v429 = vld [vmem:[%s255 + $0x58] sm:$0xff]
      %v430 = vld [vmem:[%s255 + $0x60] sm:$0xff]
      %v431 = vld [vmem:[%s255 + $0x68] sm:$0xff]
      %v432 = vld [vmem:[%s255 + $0x70] sm:$0xff]
      %v433 = vld [vmem:[%s255 + $0x78] sm:$0xff]
      %v434 = vld [vmem:[%s255 + $0x80] sm:$0xff]
      %v435 = vld [vmem:[%s255 + $0x88] sm:$0xff]
      %v436 = vld [vmem:[%s255 + $0x90] sm:$0xff]
      %v437 = vld [vmem:[%s255 + $0x98] sm:$0xff]
      %v438 = vld [vmem:[%s255 + $0xa0] sm:$0xff]
      %v439 = vld [vmem:[%s255 + $0xa8] sm:$0xff]
      %v440 = vld [vmem:[%s255 + $0xb0] sm:$0xff]
      %v441 = vld [vmem:[%s255 + $0xb8] sm:$0xff]
      %v442 = vld [vmem:[%s255 + $0xc0] sm:$0xff]
      %v443 = vld [vmem:[%s255 + $0xc8] sm:$0xff]
      %v444 = vld [vmem:[%s255 + $0xd0] sm:$0xff]
      %v445 = vld [vmem:[%s255 + $0xd8] sm:$0xff]
      %v446 = vld [vmem:[%s255 + $0xe0] sm:$0xff]
      %v447 = vld [vmem:[%s255 + $0xe8] sm:$0xff]
      %v448 = vld [vmem:[%s255 + $0xf0] sm:$0xff]
      %v449 = vld [vmem:[%s255 + $0xf8] sm:$0xff]
      %v450 = vld [vmem:[%s263] sm:$0xff]
      %v451 = vld [vmem:[%s263 + $0x8] sm:$0xff]
      %v452 = vld [vmem:[%s263 + $0x10] sm:$0xff]
      %v453 = vld [vmem:[%s263 + $0x18] sm:$0xff]
      %v454 = vld [vmem:[%s263 + $0x20] sm:$0xff]
      %v455 = vld [vmem:[%s263 + $0x28] sm:$0xff]
      %v456 = vld [vmem:[%s263 + $0x30] sm:$0xff]
      %v457 = vld [vmem:[%s263 + $0x38] sm:$0xff]
      %v458 = vld [vmem:[%s263 + $0x40] sm:$0xff]
      %v459 = vld [vmem:[%s263 + $0x48] sm:$0xff]
      %v460 = vld [vmem:[%s263 + $0x50] sm:$0xff]
      %v461 = vld [vmem:[%s263 + $0x58] sm:$0xff]
      %v462 = vld [vmem:[%s263 + $0x60] sm:$0xff]
      %v463 = vld [vmem:[%s263 + $0x68] sm:$0xff]
      %v464 = vld [vmem:[%s263 + $0x70] sm:$0xff]
      %v465 = vld [vmem:[%s263 + $0x78] sm:$0xff]
      %v466 = vld [vmem:[%s263 + $0x80] sm:$0xff]
      %v467 = vld [vmem:[%s263 + $0x88] sm:$0xff]
      %v468 = vld [vmem:[%s263 + $0x90] sm:$0xff]
      %v469 = vld [vmem:[%s263 + $0x98] sm:$0xff]
      %v470 = vld [vmem:[%s263 + $0xa0] sm:$0xff]
      %v471 = vld [vmem:[%s263 + $0xa8] sm:$0xff]
      %v472 = vld [vmem:[%s263 + $0xb0] sm:$0xff]
      %v473 = vld [vmem:[%s263 + $0xb8] sm:$0xff]
      %v474 = vld [vmem:[%s263 + $0xc0] sm:$0xff]
      %v475 = vld [vmem:[%s263 + $0xc8] sm:$0xff]
      %v476 = vld [vmem:[%s263 + $0xd0] sm:$0xff]
      %v477 = vld [vmem:[%s263 + $0xd8] sm:$0xff]
      %v478 = vld [vmem:[%s263 + $0xe0] sm:$0xff]
      %v479 = vld [vmem:[%s263 + $0xe8] sm:$0xff]
      %v480 = vld [vmem:[%s263 + $0xf0] sm:$0xff]
      %v481 = vld [vmem:[%s263 + $0xf8] sm:$0xff]
      %v514 = vunpack.c.l.b16 %v418
      %v515 = vunpack.c.h.b16 %v418
      %v516 = vunpack.c.l.b16 %v419
      %v517 = vunpack.c.h.b16 %v419
      %v518 = vunpack.c.l.b16 %v420
      %v519 = vunpack.c.h.b16 %v420
      %v520 = vunpack.c.l.b16 %v421
      %v521 = vunpack.c.h.b16 %v421
      %v522 = vunpack.c.l.b16 %v422
      %v523 = vunpack.c.h.b16 %v422
      %v524 = vunpack.c.l.b16 %v423
      %v525 = vunpack.c.h.b16 %v423
      %v526 = vunpack.c.l.b16 %v424
      %v527 = vunpack.c.h.b16 %v424
      %v528 = vunpack.c.l.b16 %v425
      %v529 = vunpack.c.h.b16 %v425
      %v530 = vunpack.c.l.b16 %v426
      %v531 = vunpack.c.h.b16 %v426
      %v532 = vunpack.c.l.b16 %v427
      %v533 = vunpack.c.h.b16 %v427
      %v534 = vunpack.c.l.b16 %v428
      %v535 = vunpack.c.h.b16 %v428
      %v536 = vunpack.c.l.b16 %v429
      %v537 = vunpack.c.h.b16 %v429
      %v538 = vunpack.c.l.b16 %v430
      %v539 = vunpack.c.h.b16 %v430
      %v540 = vunpack.c.l.b16 %v431
      %v541 = vunpack.c.h.b16 %v431
      %v542 = vunpack.c.l.b16 %v432
      %v543 = vunpack.c.h.b16 %v432
      %v544 = vunpack.c.l.b16 %v433
      %v545 = vunpack.c.h.b16 %v433
      %v546 = vunpack.c.l.b16 %v434
      %v547 = vunpack.c.h.b16 %v434
      %v548 = vunpack.c.l.b16 %v435
      %v549 = vunpack.c.h.b16 %v435
      %v550 = vunpack.c.l.b16 %v436
      %v551 = vunpack.c.h.b16 %v436
      %v552 = vunpack.c.l.b16 %v437
      %v553 = vunpack.c.h.b16 %v437
      %v554 = vunpack.c.l.b16 %v438
      %v555 = vunpack.c.h.b16 %v438
      %v556 = vunpack.c.l.b16 %v439
      %v557 = vunpack.c.h.b16 %v439
      %v558 = vunpack.c.l.b16 %v440
      %v559 = vunpack.c.h.b16 %v440
      %v560 = vunpack.c.l.b16 %v441
      %v561 = vunpack.c.h.b16 %v441
      %v562 = vunpack.c.l.b16 %v442
      %v563 = vunpack.c.h.b16 %v442
      %v564 = vunpack.c.l.b16 %v443
      %v565 = vunpack.c.h.b16 %v443
      %v566 = vunpack.c.l.b16 %v444
      %v567 = vunpack.c.h.b16 %v444
      %v568 = vunpack.c.l.b16 %v445
      %v569 = vunpack.c.h.b16 %v445
      %v570 = vunpack.c.l.b16 %v446
      %v571 = vunpack.c.h.b16 %v446
      %v572 = vunpack.c.l.b16 %v447
      %v573 = vunpack.c.h.b16 %v447
      %v574 = vunpack.c.l.b16 %v448
      %v575 = vunpack.c.h.b16 %v448
      %v576 = vunpack.c.l.b16 %v449
      %v577 = vunpack.c.h.b16 %v449
      %v578 = vpack.c.b16 %v516, %v514
      %v579 = vpack.c.b16 %v517, %v515
      %v580 = vpack.c.b16 %v520, %v518
      %v581 = vpack.c.b16 %v521, %v519
      %v582 = vpack.c.b16 %v524, %v522
      %v583 = vpack.c.b16 %v525, %v523
      %v584 = vpack.c.b16 %v528, %v526
      %v585 = vpack.c.b16 %v529, %v527
      %v586 = vpack.c.b16 %v532, %v530
      %v587 = vpack.c.b16 %v533, %v531
      %v588 = vpack.c.b16 %v536, %v534
      %v589 = vpack.c.b16 %v537, %v535
      %v590 = vpack.c.b16 %v540, %v538
      %v591 = vpack.c.b16 %v541, %v539
      %v592 = vpack.c.b16 %v544, %v542
      %v593 = vpack.c.b16 %v545, %v543
      %v594 = vpack.c.b16 %v548, %v546
      %v595 = vpack.c.b16 %v549, %v547
      %v596 = vpack.c.b16 %v552, %v550
      %v597 = vpack.c.b16 %v553, %v551
      %v598 = vpack.c.b16 %v556, %v554
      %v599 = vpack.c.b16 %v557, %v555
      %v600 = vpack.c.b16 %v560, %v558
      %v601 = vpack.c.b16 %v561, %v559
      %v602 = vpack.c.b16 %v564, %v562
      %v603 = vpack.c.b16 %v565, %v563
      %v604 = vpack.c.b16 %v568, %v566
      %v605 = vpack.c.b16 %v569, %v567
      %v606 = vpack.c.b16 %v572, %v570
      %v607 = vpack.c.b16 %v573, %v571
      %v608 = vpack.c.b16 %v576, %v574
      %v609 = vpack.c.b16 %v577, %v575
      %v674 = vunpack.c.l.b16 %v450
      %v675 = vunpack.c.h.b16 %v450
      %v676 = vunpack.c.l.b16 %v451
      %v677 = vunpack.c.h.b16 %v451
      %v678 = vunpack.c.l.b16 %v452
      %v679 = vunpack.c.h.b16 %v452
      %v680 = vunpack.c.l.b16 %v453
      %v681 = vunpack.c.h.b16 %v453
      %v682 = vunpack.c.l.b16 %v454
      %v683 = vunpack.c.h.b16 %v454
      %v684 = vunpack.c.l.b16 %v455
      %v685 = vunpack.c.h.b16 %v455
      %v686 = vunpack.c.l.b16 %v456
      %v687 = vunpack.c.h.b16 %v456
      %v688 = vunpack.c.l.b16 %v457
      %v689 = vunpack.c.h.b16 %v457
      %v690 = vunpack.c.l.b16 %v458
      %v691 = vunpack.c.h.b16 %v458
      %v692 = vunpack.c.l.b16 %v459
      %v693 = vunpack.c.h.b16 %v459
      %v694 = vunpack.c.l.b16 %v460
      %v695 = vunpack.c.h.b16 %v460
      %v696 = vunpack.c.l.b16 %v461
      %v697 = vunpack.c.h.b16 %v461
      %v698 = vunpack.c.l.b16 %v462
      %v699 = vunpack.c.h.b16 %v462
      %v700 = vunpack.c.l.b16 %v463
      %v701 = vunpack.c.h.b16 %v463
      %v702 = vunpack.c.l.b16 %v464
      %v703 = vunpack.c.h.b16 %v464
      %v704 = vunpack.c.l.b16 %v465
      %v705 = vunpack.c.h.b16 %v465
      %v706 = vunpack.c.l.b16 %v466
      %v707 = vunpack.c.h.b16 %v466
      %v708 = vunpack.c.l.b16 %v467
      %v709 = vunpack.c.h.b16 %v467
      %v710 = vunpack.c.l.b16 %v468
      %v711 = vunpack.c.h.b16 %v468
      %v712 = vunpack.c.l.b16 %v469
      %v713 = vunpack.c.h.b16 %v469
      %v714 = vunpack.c.l.b16 %v470
      %v715 = vunpack.c.h.b16 %v470
      %v716 = vunpack.c.l.b16 %v471
      %v717 = vunpack.c.h.b16 %v471
      %v718 = vunpack.c.l.b16 %v472
      %v719 = vunpack.c.h.b16 %v472
      %v720 = vunpack.c.l.b16 %v473
      %v721 = vunpack.c.h.b16 %v473
      %v722 = vunpack.c.l.b16 %v474
      %v723 = vunpack.c.h.b16 %v474
      %v724 = vunpack.c.l.b16 %v475
      %v725 = vunpack.c.h.b16 %v475
      %v726 = vunpack.c.l.b16 %v476
      %v727 = vunpack.c.h.b16 %v476
      %v728 = vunpack.c.l.b16 %v477
      %v729 = vunpack.c.h.b16 %v477
      %v730 = vunpack.c.l.b16 %v478
      %v731 = vunpack.c.h.b16 %v478
      %v732 = vunpack.c.l.b16 %v479
      %v733 = vunpack.c.h.b16 %v479
      %v734 = vunpack.c.l.b16 %v480
      %v735 = vunpack.c.h.b16 %v480
      %v736 = vunpack.c.l.b16 %v481
      %v737 = vunpack.c.h.b16 %v481
      %v738 = vpack.c.b16 %v676, %v674
      %v739 = vpack.c.b16 %v677, %v675
      %v740 = vpack.c.b16 %v680, %v678
      %v741 = vpack.c.b16 %v681, %v679
      %v742 = vpack.c.b16 %v684, %v682
      %v743 = vpack.c.b16 %v685, %v683
      %v744 = vpack.c.b16 %v688, %v686
      %v745 = vpack.c.b16 %v689, %v687
      %v746 = vpack.c.b16 %v692, %v690
      %v747 = vpack.c.b16 %v693, %v691
      %v748 = vpack.c.b16 %v696, %v694
      %v749 = vpack.c.b16 %v697, %v695
      %v750 = vpack.c.b16 %v700, %v698
      %v751 = vpack.c.b16 %v701, %v699
      %v752 = vpack.c.b16 %v704, %v702
      %v753 = vpack.c.b16 %v705, %v703
      %v754 = vpack.c.b16 %v708, %v706
      %v755 = vpack.c.b16 %v709, %v707
      %v756 = vpack.c.b16 %v712, %v710
      %v757 = vpack.c.b16 %v713, %v711
      %v758 = vpack.c.b16 %v716, %v714
      %v759 = vpack.c.b16 %v717, %v715
      %v760 = vpack.c.b16 %v720, %v718
      %v761 = vpack.c.b16 %v721, %v719
      %v762 = vpack.c.b16 %v724, %v722
      %v763 = vpack.c.b16 %v725, %v723
      %v764 = vpack.c.b16 %v728, %v726
      %v765 = vpack.c.b16 %v729, %v727
      %v766 = vpack.c.b16 %v732, %v730
      %v767 = vpack.c.b16 %v733, %v731
      %v768 = vpack.c.b16 %v736, %v734
      %v769 = vpack.c.b16 %v737, %v735
      %802 = vmatpush.bf16.msra.mxu0 %v752
      %803 = vmatpush.bf16.msra.mxu0 %v750
      %804 = vmatpush.bf16.msra.mxu0 %v748
      %805 = vmatpush.bf16.msra.mxu0 %v746
      %806 = vmatpush.bf16.msra.mxu0 %v744
      %807 = vmatpush.bf16.msra.mxu0 %v742
      %808 = vmatpush.bf16.msra.mxu0 %v740
      %809 = vmatpush.bf16.msra.mxu0 %v738
      %810 = vmatmul.bf16.gmra.mxu0 %v578
      %v811 = vpop.f32.mrf.mxu0
      %v812 = vadd.f32 0.0, %v811
      %v813 = vpop.f32.mrf.mxu0
      %v814 = vadd.f32 0.0, %v813
      %815 = vmatmul.bf16.gmra.mxu0 %v580
      %v816 = vpop.f32.mrf.mxu0
      %v817 = vadd.f32 0.0, %v816
      %v818 = vpop.f32.mrf.mxu0
      %v819 = vadd.f32 0.0, %v818
      %820 = vmatmul.bf16.gmra.mxu0 %v582
      %v821 = vpop.f32.mrf.mxu0
      %v822 = vadd.f32 0.0, %v821
      %v823 = vpop.f32.mrf.mxu0
      %v824 = vadd.f32 0.0, %v823
      %825 = vmatmul.bf16.gmra.mxu0 %v584
      %v826 = vpop.f32.mrf.mxu0
      %v827 = vadd.f32 0.0, %v826
      %v828 = vpop.f32.mrf.mxu0
      %v829 = vadd.f32 0.0, %v828
      %830 = vmatmul.bf16.gmra.mxu0 %v586
      %v831 = vpop.f32.mrf.mxu0
      %v832 = vadd.f32 0.0, %v831
      %v833 = vpop.f32.mrf.mxu0
      %v834 = vadd.f32 0.0, %v833
      %835 = vmatmul.bf16.gmra.mxu0 %v588
      %v836 = vpop.f32.mrf.mxu0
      %v837 = vadd.f32 0.0, %v836
      %v838 = vpop.f32.mrf.mxu0
      %v839 = vadd.f32 0.0, %v838
      %840 = vmatmul.bf16.gmra.mxu0 %v590
      %v841 = vpop.f32.mrf.mxu0
      %v842 = vadd.f32 0.0, %v841
      %v843 = vpop.f32.mrf.mxu0
      %v844 = vadd.f32 0.0, %v843
      %845 = vmatmul.bf16.gmra.mxu0 %v592
      %v846 = vpop.f32.mrf.mxu0
      %v847 = vadd.f32 0.0, %v846
      %v848 = vpop.f32.mrf.mxu0
      %v849 = vadd.f32 0.0, %v848
      %850 = vmatmul.bf16.gmra.mxu0 %v594
      %v851 = vpop.f32.mrf.mxu0
      %v852 = vadd.f32 0.0, %v851
      %v853 = vpop.f32.mrf.mxu0
      %v854 = vadd.f32 0.0, %v853
      %855 = vmatmul.bf16.gmra.mxu0 %v596
      %v856 = vpop.f32.mrf.mxu0
      %v857 = vadd.f32 0.0, %v856
      %v858 = vpop.f32.mrf.mxu0
      %v859 = vadd.f32 0.0, %v858
      %860 = vmatmul.bf16.gmra.mxu0 %v598
      %v861 = vpop.f32.mrf.mxu0
      %v862 = vadd.f32 0.0, %v861
      %v863 = vpop.f32.mrf.mxu0
      %v864 = vadd.f32 0.0, %v863
      %865 = vmatmul.bf16.gmra.mxu0 %v600
      %v866 = vpop.f32.mrf.mxu0
      %v867 = vadd.f32 0.0, %v866
      %v868 = vpop.f32.mrf.mxu0
      %v869 = vadd.f32 0.0, %v868
      %870 = vmatmul.bf16.gmra.mxu0 %v602
      %v871 = vpop.f32.mrf.mxu0
      %v872 = vadd.f32 0.0, %v871
      %v873 = vpop.f32.mrf.mxu0
      %v874 = vadd.f32 0.0, %v873
      %875 = vmatmul.bf16.gmra.mxu0 %v604
      %v876 = vpop.f32.mrf.mxu0
      %v877 = vadd.f32 0.0, %v876
      %v878 = vpop.f32.mrf.mxu0
      %v879 = vadd.f32 0.0, %v878
      %880 = vmatmul.bf16.gmra.mxu0 %v606
      %v881 = vpop.f32.mrf.mxu0
      %v882 = vadd.f32 0.0, %v881
      %v883 = vpop.f32.mrf.mxu0
      %v884 = vadd.f32 0.0, %v883
      %885 = vmatmul.bf16.gmra.mxu0 %v608
      %v886 = vpop.f32.mrf.mxu0
      %v887 = vadd.f32 0.0, %v886
      %v888 = vpop.f32.mrf.mxu0
      %v889 = vadd.f32 0.0, %v888
      %890 = vdwg.mxu0
      %891 = vmatpush.bf16.msra.mxu0 %v768
      %892 = vmatpush.bf16.msra.mxu0 %v766
      %893 = vmatpush.bf16.msra.mxu0 %v764
      %894 = vmatpush.bf16.msra.mxu0 %v762
      %895 = vmatpush.bf16.msra.mxu0 %v760
      %896 = vmatpush.bf16.msra.mxu0 %v758
      %897 = vmatpush.bf16.msra.mxu0 %v756
      %898 = vmatpush.bf16.msra.mxu0 %v754
      %899 = vmatmul.bf16.gmra.mxu0 %v579
      %v900 = vpop.f32.mrf.mxu0
      %v901 = vadd.f32 %v812, %v900
      %v902 = vpop.f32.mrf.mxu0
      %v903 = vadd.f32 %v814, %v902
      %904 = vmatmul.bf16.gmra.mxu0 %v581
      %v905 = vpop.f32.mrf.mxu0
      %v906 = vadd.f32 %v817, %v905
      %v907 = vpop.f32.mrf.mxu0
      %v908 = vadd.f32 %v819, %v907
      %909 = vmatmul.bf16.gmra.mxu0 %v583
      %v910 = vpop.f32.mrf.mxu0
      %v911 = vadd.f32 %v822, %v910
      %v912 = vpop.f32.mrf.mxu0
      %v913 = vadd.f32 %v824, %v912
      %914 = vmatmul.bf16.gmra.mxu0 %v585
      %v915 = vpop.f32.mrf.mxu0
      %v916 = vadd.f32 %v827, %v915
      %v917 = vpop.f32.mrf.mxu0
      %v918 = vadd.f32 %v829, %v917
      %919 = vmatmul.bf16.gmra.mxu0 %v587
      %v920 = vpop.f32.mrf.mxu0
      %v921 = vadd.f32 %v832, %v920
      %v922 = vpop.f32.mrf.mxu0
      %v923 = vadd.f32 %v834, %v922
      %924 = vmatmul.bf16.gmra.mxu0 %v589
      %v925 = vpop.f32.mrf.mxu0
      %v926 = vadd.f32 %v837, %v925
      %v927 = vpop.f32.mrf.mxu0
      %v928 = vadd.f32 %v839, %v927
      %929 = vmatmul.bf16.gmra.mxu0 %v591
      %v930 = vpop.f32.mrf.mxu0
      %v931 = vadd.f32 %v842, %v930
      %v932 = vpop.f32.mrf.mxu0
      %v933 = vadd.f32 %v844, %v932
      %934 = vmatmul.bf16.gmra.mxu0 %v593
      %v935 = vpop.f32.mrf.mxu0
      %v936 = vadd.f32 %v847, %v935
      %v937 = vpop.f32.mrf.mxu0
      %v938 = vadd.f32 %v849, %v937
      %939 = vmatmul.bf16.gmra.mxu0 %v595
      %v940 = vpop.f32.mrf.mxu0
      %v941 = vadd.f32 %v852, %v940
      %v942 = vpop.f32.mrf.mxu0
      %v943 = vadd.f32 %v854, %v942
      %944 = vmatmul.bf16.gmra.mxu0 %v597
      %v945 = vpop.f32.mrf.mxu0
      %v946 = vadd.f32 %v857, %v945
      %v947 = vpop.f32.mrf.mxu0
      %v948 = vadd.f32 %v859, %v947
      %949 = vmatmul.bf16.gmra.mxu0 %v599
      %v950 = vpop.f32.mrf.mxu0
      %v951 = vadd.f32 %v862, %v950
      %v952 = vpop.f32.mrf.mxu0
      %v953 = vadd.f32 %v864, %v952
      %954 = vmatmul.bf16.gmra.mxu0 %v601
      %v955 = vpop.f32.mrf.mxu0
      %v956 = vadd.f32 %v867, %v955
      %v957 = vpop.f32.mrf.mxu0
      %v958 = vadd.f32 %v869, %v957
      %959 = vmatmul.bf16.gmra.mxu0 %v603
      %v960 = vpop.f32.mrf.mxu0
      %v961 = vadd.f32 %v872, %v960
      %v962 = vpop.f32.mrf.mxu0
      %v963 = vadd.f32 %v874, %v962
      %964 = vmatmul.bf16.gmra.mxu0 %v605
      %v965 = vpop.f32.mrf.mxu0
      %v966 = vadd.f32 %v877, %v965
      %v967 = vpop.f32.mrf.mxu0
      %v968 = vadd.f32 %v879, %v967
      %969 = vmatmul.bf16.gmra.mxu0 %v607
      %v970 = vpop.f32.mrf.mxu0
      %v971 = vadd.f32 %v882, %v970
      %v972 = vpop.f32.mrf.mxu0
      %v973 = vadd.f32 %v884, %v972
      %974 = vmatmul.bf16.gmra.mxu0 %v609
      %v975 = vpop.f32.mrf.mxu0
      %v976 = vadd.f32 %v887, %v975
      %v977 = vpop.f32.mrf.mxu0
      %v978 = vadd.f32 %v889, %v977
      %979 = vdwg.mxu0
      %980 = vmatpush.bf16.msra.mxu0 %v753
      %981 = vmatpush.bf16.msra.mxu0 %v751
      %982 = vmatpush.bf16.msra.mxu0 %v749
      %983 = vmatpush.bf16.msra.mxu0 %v747
      %984 = vmatpush.bf16.msra.mxu0 %v745
      %985 = vmatpush.bf16.msra.mxu0 %v743
      %986 = vmatpush.bf16.msra.mxu0 %v741
      %987 = vmatpush.bf16.msra.mxu0 %v739
      %988 = vmatmul.bf16.gmra.mxu0 %v578
      %v989 = vpop.f32.mrf.mxu0
      %v990 = vadd.f32 0.0, %v989
      %v991 = vpop.f32.mrf.mxu0
      %v992 = vadd.f32 0.0, %v991
      %993 = vmatmul.bf16.gmra.mxu0 %v580
      %v994 = vpop.f32.mrf.mxu0
      %v995 = vadd.f32 0.0, %v994
      %v996 = vpop.f32.mrf.mxu0
      %v997 = vadd.f32 0.0, %v996
      %998 = vmatmul.bf16.gmra.mxu0 %v582
      %v999 = vpop.f32.mrf.mxu0
      %v1000 = vadd.f32 0.0, %v999
      %v1001 = vpop.f32.mrf.mxu0
      %v1002 = vadd.f32 0.0, %v1001
      %1003 = vmatmul.bf16.gmra.mxu0 %v584
      %v1004 = vpop.f32.mrf.mxu0
      %v1005 = vadd.f32 0.0, %v1004
      %v1006 = vpop.f32.mrf.mxu0
      %v1007 = vadd.f32 0.0, %v1006
      %1008 = vmatmul.bf16.gmra.mxu0 %v586
      %v1009 = vpop.f32.mrf.mxu0
      %v1010 = vadd.f32 0.0, %v1009
      %v1011 = vpop.f32.mrf.mxu0
      %v1012 = vadd.f32 0.0, %v1011
      %1013 = vmatmul.bf16.gmra.mxu0 %v588
      %v1014 = vpop.f32.mrf.mxu0
      %v1015 = vadd.f32 0.0, %v1014
      %v1016 = vpop.f32.mrf.mxu0
      %v1017 = vadd.f32 0.0, %v1016
      %1018 = vmatmul.bf16.gmra.mxu0 %v590
      %v1019 = vpop.f32.mrf.mxu0
      %v1020 = vadd.f32 0.0, %v1019
      %v1021 = vpop.f32.mrf.mxu0
      %v1022 = vadd.f32 0.0, %v1021
      %1023 = vmatmul.bf16.gmra.mxu0 %v592
      %v1024 = vpop.f32.mrf.mxu0
      %v1025 = vadd.f32 0.0, %v1024
      %v1026 = vpop.f32.mrf.mxu0
      %v1027 = vadd.f32 0.0, %v1026
      %1028 = vmatmul.bf16.gmra.mxu0 %v594
      %v1029 = vpop.f32.mrf.mxu0
      %v1030 = vadd.f32 0.0, %v1029
      %v1031 = vpop.f32.mrf.mxu0
      %v1032 = vadd.f32 0.0, %v1031
      %1033 = vmatmul.bf16.gmra.mxu0 %v596
      %v1034 = vpop.f32.mrf.mxu0
      %v1035 = vadd.f32 0.0, %v1034
      %v1036 = vpop.f32.mrf.mxu0
      %v1037 = vadd.f32 0.0, %v1036
      %1038 = vmatmul.bf16.gmra.mxu0 %v598
      %v1039 = vpop.f32.mrf.mxu0
      %v1040 = vadd.f32 0.0, %v1039
      %v1041 = vpop.f32.mrf.mxu0
      %v1042 = vadd.f32 0.0, %v1041
      %1043 = vmatmul.bf16.gmra.mxu0 %v600
      %v1044 = vpop.f32.mrf.mxu0
      %v1045 = vadd.f32 0.0, %v1044
      %v1046 = vpop.f32.mrf.mxu0
      %v1047 = vadd.f32 0.0, %v1046
      %1048 = vmatmul.bf16.gmra.mxu0 %v602
      %v1049 = vpop.f32.mrf.mxu0
      %v1050 = vadd.f32 0.0, %v1049
      %v1051 = vpop.f32.mrf.mxu0
      %v1052 = vadd.f32 0.0, %v1051
      %1053 = vmatmul.bf16.gmra.mxu0 %v604
      %v1054 = vpop.f32.mrf.mxu0
      %v1055 = vadd.f32 0.0, %v1054
      %v1056 = vpop.f32.mrf.mxu0
      %v1057 = vadd.f32 0.0, %v1056
      %1058 = vmatmul.bf16.gmra.mxu0 %v606
      %v1059 = vpop.f32.mrf.mxu0
      %v1060 = vadd.f32 0.0, %v1059
      %v1061 = vpop.f32.mrf.mxu0
      %v1062 = vadd.f32 0.0, %v1061
      %1063 = vmatmul.bf16.gmra.mxu0 %v608
      %v1064 = vpop.f32.mrf.mxu0
      %v1065 = vadd.f32 0.0, %v1064
      %v1066 = vpop.f32.mrf.mxu0
      %v1067 = vadd.f32 0.0, %v1066
      %1068 = vdwg.mxu0
      %1069 = vmatpush.bf16.msra.mxu0 %v769
      %1070 = vmatpush.bf16.msra.mxu0 %v767
      %1071 = vmatpush.bf16.msra.mxu0 %v765
      %1072 = vmatpush.bf16.msra.mxu0 %v763
      %1073 = vmatpush.bf16.msra.mxu0 %v761
      %1074 = vmatpush.bf16.msra.mxu0 %v759
      %1075 = vmatpush.bf16.msra.mxu0 %v757
      %1076 = vmatpush.bf16.msra.mxu0 %v755
      %1077 = vmatmul.bf16.gmra.mxu0 %v579
      %v1078 = vpop.f32.mrf.mxu0
      %v1079 = vadd.f32 %v990, %v1078
      %v1080 = vpop.f32.mrf.mxu0
      %v1081 = vadd.f32 %v992, %v1080
      %1082 = vmatmul.bf16.gmra.mxu0 %v581
      %v1083 = vpop.f32.mrf.mxu0
      %v1084 = vadd.f32 %v995, %v1083
      %v1085 = vpop.f32.mrf.mxu0
      %v1086 = vadd.f32 %v997, %v1085
      %1087 = vmatmul.bf16.gmra.mxu0 %v583
      %v1088 = vpop.f32.mrf.mxu0
      %v1089 = vadd.f32 %v1000, %v1088
      %v1090 = vpop.f32.mrf.mxu0
      %v1091 = vadd.f32 %v1002, %v1090
      %1092 = vmatmul.bf16.gmra.mxu0 %v585
      %v1093 = vpop.f32.mrf.mxu0
      %v1094 = vadd.f32 %v1005, %v1093
      %v1095 = vpop.f32.mrf.mxu0
      %v1096 = vadd.f32 %v1007, %v1095
      %1097 = vmatmul.bf16.gmra.mxu0 %v587
      %v1098 = vpop.f32.mrf.mxu0
      %v1099 = vadd.f32 %v1010, %v1098
      %v1100 = vpop.f32.mrf.mxu0
      %v1101 = vadd.f32 %v1012, %v1100
      %1102 = vmatmul.bf16.gmra.mxu0 %v589
      %v1103 = vpop.f32.mrf.mxu0
      %v1104 = vadd.f32 %v1015, %v1103
      %v1105 = vpop.f32.mrf.mxu0
      %v1106 = vadd.f32 %v1017, %v1105
      %1107 = vmatmul.bf16.gmra.mxu0 %v591
      %v1108 = vpop.f32.mrf.mxu0
      %v1109 = vadd.f32 %v1020, %v1108
      %v1110 = vpop.f32.mrf.mxu0
      %v1111 = vadd.f32 %v1022, %v1110
      %1112 = vmatmul.bf16.gmra.mxu0 %v593
      %v1113 = vpop.f32.mrf.mxu0
      %v1114 = vadd.f32 %v1025, %v1113
      %v1115 = vpop.f32.mrf.mxu0
      %v1116 = vadd.f32 %v1027, %v1115
      %1117 = vmatmul.bf16.gmra.mxu0 %v595
      %v1118 = vpop.f32.mrf.mxu0
      %v1119 = vadd.f32 %v1030, %v1118
      %v1120 = vpop.f32.mrf.mxu0
      %v1121 = vadd.f32 %v1032, %v1120
      %1122 = vmatmul.bf16.gmra.mxu0 %v597
      %v1123 = vpop.f32.mrf.mxu0
      %v1124 = vadd.f32 %v1035, %v1123
      %v1125 = vpop.f32.mrf.mxu0
      %v1126 = vadd.f32 %v1037, %v1125
      %1127 = vmatmul.bf16.gmra.mxu0 %v599
      %v1128 = vpop.f32.mrf.mxu0
      %v1129 = vadd.f32 %v1040, %v1128
      %v1130 = vpop.f32.mrf.mxu0
      %v1131 = vadd.f32 %v1042, %v1130
      %1132 = vmatmul.bf16.gmra.mxu0 %v601
      %v1133 = vpop.f32.mrf.mxu0
      %v1134 = vadd.f32 %v1045, %v1133
      %v1135 = vpop.f32.mrf.mxu0
      %v1136 = vadd.f32 %v1047, %v1135
      %1137 = vmatmul.bf16.gmra.mxu0 %v603
      %v1138 = vpop.f32.mrf.mxu0
      %v1139 = vadd.f32 %v1050, %v1138
      %v1140 = vpop.f32.mrf.mxu0
      %v1141 = vadd.f32 %v1052, %v1140
      %1142 = vmatmul.bf16.gmra.mxu0 %v605
      %v1143 = vpop.f32.mrf.mxu0
      %v1144 = vadd.f32 %v1055, %v1143
      %v1145 = vpop.f32.mrf.mxu0
      %v1146 = vadd.f32 %v1057, %v1145
      %1147 = vmatmul.bf16.gmra.mxu0 %v607
      %v1148 = vpop.f32.mrf.mxu0
      %v1149 = vadd.f32 %v1060, %v1148
      %v1150 = vpop.f32.mrf.mxu0
      %v1151 = vadd.f32 %v1062, %v1150
      %1152 = vmatmul.bf16.gmra.mxu0 %v609
      %v1153 = vpop.f32.mrf.mxu0
      %v1154 = vadd.f32 %v1065, %v1153
      %v1155 = vpop.f32.mrf.mxu0
      %v1156 = vadd.f32 %v1067, %v1155
      %1157 = vdwg.mxu0
      %v1158 = vadd.f32 %v354, %v901
      %v1159 = vadd.f32 %v355, %v1079
      %v1160 = vadd.f32 %v356, %v903
      %v1161 = vadd.f32 %v357, %v1081
      %v1162 = vadd.f32 %v358, %v906
      %v1163 = vadd.f32 %v359, %v1084
      %v1164 = vadd.f32 %v360, %v908
      %v1165 = vadd.f32 %v361, %v1086
      %v1166 = vadd.f32 %v362, %v911
      %v1167 = vadd.f32 %v363, %v1089
      %v1168 = vadd.f32 %v364, %v913
      %v1169 = vadd.f32 %v365, %v1091
      %v1170 = vadd.f32 %v366, %v916
      %v1171 = vadd.f32 %v367, %v1094
      %v1172 = vadd.f32 %v368, %v918
      %v1173 = vadd.f32 %v369, %v1096
      %v1174 = vadd.f32 %v370, %v921
      %v1175 = vadd.f32 %v371, %v1099
      %v1176 = vadd.f32 %v372, %v923
      %v1177 = vadd.f32 %v373, %v1101
      %v1178 = vadd.f32 %v374, %v926
      %v1179 = vadd.f32 %v375, %v1104
      %v1180 = vadd.f32 %v376, %v928
      %v1181 = vadd.f32 %v377, %v1106
      %v1182 = vadd.f32 %v378, %v931
      %v1183 = vadd.f32 %v379, %v1109
      %v1184 = vadd.f32 %v380, %v933
      %v1185 = vadd.f32 %v381, %v1111
      %v1186 = vadd.f32 %v382, %v936
      %v1187 = vadd.f32 %v383, %v1114
      %v1188 = vadd.f32 %v384, %v938
      %v1189 = vadd.f32 %v385, %v1116
      %v1190 = vadd.f32 %v386, %v941
      %v1191 = vadd.f32 %v387, %v1119
      %v1192 = vadd.f32 %v388, %v943
      %v1193 = vadd.f32 %v389, %v1121
      %v1194 = vadd.f32 %v390, %v946
      %v1195 = vadd.f32 %v391, %v1124
      %v1196 = vadd.f32 %v392, %v948
      %v1197 = vadd.f32 %v393, %v1126
      %v1198 = vadd.f32 %v394, %v951
      %v1199 = vadd.f32 %v395, %v1129
      %v1200 = vadd.f32 %v396, %v953
      %v1201 = vadd.f32 %v397, %v1131
      %v1202 = vadd.f32 %v398, %v956
      %v1203 = vadd.f32 %v399, %v1134
      %v1204 = vadd.f32 %v400, %v958
      %v1205 = vadd.f32 %v401, %v1136
      %v1206 = vadd.f32 %v402, %v961
      %v1207 = vadd.f32 %v403, %v1139
      %v1208 = vadd.f32 %v404, %v963
      %v1209 = vadd.f32 %v405, %v1141
      %v1210 = vadd.f32 %v406, %v966
      %v1211 = vadd.f32 %v407, %v1144
      %v1212 = vadd.f32 %v408, %v968
      %v1213 = vadd.f32 %v409, %v1146
      %v1214 = vadd.f32 %v410, %v971
      %v1215 = vadd.f32 %v411, %v1149
      %v1216 = vadd.f32 %v412, %v973
      %v1217 = vadd.f32 %v413, %v1151
      %v1218 = vadd.f32 %v414, %v976
      %v1219 = vadd.f32 %v415, %v1154
      %v1220 = vadd.f32 %v416, %v978
      %v1221 = vadd.f32 %v417, %v1156
      %1222 = vst [vmem:[#allocation2] sm:$0xff] %v1158
      %1223 = vst [vmem:[#allocation2 + $0x8] sm:$0xff] %v1159
      %1224 = vst [vmem:[#allocation2 + $0x10] sm:$0xff] %v1160
      %1225 = vst [vmem:[#allocation2 + $0x18] sm:$0xff] %v1161
      %1226 = vst [vmem:[#allocation2 + $0x20] sm:$0xff] %v1162
      %1227 = vst [vmem:[#allocation2 + $0x28] sm:$0xff] %v1163
      %1228 = vst [vmem:[#allocation2 + $0x30] sm:$0xff] %v1164
      %1229 = vst [vmem:[#allocation2 + $0x38] sm:$0xff] %v1165
      %1230 = vst [vmem:[#allocation2 + $0x40] sm:$0xff] %v1166
      %1231 = vst [vmem:[#allocation2 + $0x48] sm:$0xff] %v1167
      %1232 = vst [vmem:[#allocation2 + $0x50] sm:$0xff] %v1168
      %1233 = vst [vmem:[#allocation2 + $0x58] sm:$0xff] %v1169
      %1234 = vst [vmem:[#allocation2 + $0x60] sm:$0xff] %v1170
      %1235 = vst [vmem:[#allocation2 + $0x68] sm:$0xff] %v1171
      %1236 = vst [vmem:[#allocation2 + $0x70] sm:$0xff] %v1172
      %1237 = vst [vmem:[#allocation2 + $0x78] sm:$0xff] %v1173
      %1238 = vst [vmem:[#allocation2 + $0x80] sm:$0xff] %v1174
      %1239 = vst [vmem:[#allocation2 + $0x88] sm:$0xff] %v1175
      %1240 = vst [vmem:[#allocation2 + $0x90] sm:$0xff] %v1176
      %1241 = vst [vmem:[#allocation2 + $0x98] sm:$0xff] %v1177
      %1242 = vst [vmem:[#allocation2 + $0xa0] sm:$0xff] %v1178
      %1243 = vst [vmem:[#allocation2 + $0xa8] sm:$0xff] %v1179
      %1244 = vst [vmem:[#allocation2 + $0xb0] sm:$0xff] %v1180
      %1245 = vst [vmem:[#allocation2 + $0xb8] sm:$0xff] %v1181
      %1246 = vst [vmem:[#allocation2 + $0xc0] sm:$0xff] %v1182
      %1247 = vst [vmem:[#allocation2 + $0xc8] sm:$0xff] %v1183
      %1248 = vst [vmem:[#allocation2 + $0xd0] sm:$0xff] %v1184
      %1249 = vst [vmem:[#allocation2 + $0xd8] sm:$0xff] %v1185
      %1250 = vst [vmem:[#allocation2 + $0xe0] sm:$0xff] %v1186
      %1251 = vst [vmem:[#allocation2 + $0xe8] sm:$0xff] %v1187
      %1252 = vst [vmem:[#allocation2 + $0xf0] sm:$0xff] %v1188
      %1253 = vst [vmem:[#allocation2 + $0xf8] sm:$0xff] %v1189
      %1254 = vst [vmem:[#allocation2 + $0x100] sm:$0xff] %v1190
      %1255 = vst [vmem:[#allocation2 + $0x108] sm:$0xff] %v1191
      %1256 = vst [vmem:[#allocation2 + $0x110] sm:$0xff] %v1192
      %1257 = vst [vmem:[#allocation2 + $0x118] sm:$0xff] %v1193
      %1258 = vst [vmem:[#allocation2 + $0x120] sm:$0xff] %v1194
      %1259 = vst [vmem:[#allocation2 + $0x128] sm:$0xff] %v1195
      %1260 = vst [vmem:[#allocation2 + $0x130] sm:$0xff] %v1196
      %1261 = vst [vmem:[#allocation2 + $0x138] sm:$0xff] %v1197
      %1262 = vst [vmem:[#allocation2 + $0x140] sm:$0xff] %v1198
      %1263 = vst [vmem:[#allocation2 + $0x148] sm:$0xff] %v1199
      %1264 = vst [vmem:[#allocation2 + $0x150] sm:$0xff] %v1200
      %1265 = vst [vmem:[#allocation2 + $0x158] sm:$0xff] %v1201
      %1266 = vst [vmem:[#allocation2 + $0x160] sm:$0xff] %v1202
      %1267 = vst [vmem:[#allocation2 + $0x168] sm:$0xff] %v1203
      %1268 = vst [vmem:[#allocation2 + $0x170] sm:$0xff] %v1204
      %1269 = vst [vmem:[#allocation2 + $0x178] sm:$0xff] %v1205
      %1270 = vst [vmem:[#allocation2 + $0x180] sm:$0xff] %v1206
      %1271 = vst [vmem:[#allocation2 + $0x188] sm:$0xff] %v1207
      %1272 = vst [vmem:[#allocation2 + $0x190] sm:$0xff] %v1208
      %1273 = vst [vmem:[#allocation2 + $0x198] sm:$0xff] %v1209
      %1274 = vst [vmem:[#allocation2 + $0x1a0] sm:$0xff] %v1210
      %1275 = vst [vmem:[#allocation2 + $0x1a8] sm:$0xff] %v1211
      %1276 = vst [vmem:[#allocation2 + $0x1b0] sm:$0xff] %v1212
      %1277 = vst [vmem:[#allocation2 + $0x1b8] sm:$0xff] %v1213
      %1278 = vst [vmem:[#allocation2 + $0x1c0] sm:$0xff] %v1214
      %1279 = vst [vmem:[#allocation2 + $0x1c8] sm:$0xff] %v1215
      %1280 = vst [vmem:[#allocation2 + $0x1d0] sm:$0xff] %v1216
      %1281 = vst [vmem:[#allocation2 + $0x1d8] sm:$0xff] %v1217
      %1282 = vst [vmem:[#allocation2 + $0x1e0] sm:$0xff] %v1218
      %1283 = vst [vmem:[#allocation2 + $0x1e8] sm:$0xff] %v1219
      %1284 = vst [vmem:[#allocation2 + $0x1f0] sm:$0xff] %v1220
      %1285 = vst [vmem:[#allocation2 + $0x1f8] sm:$0xff] %v1221
      // Predicated region
      $region37: #{aspp_pallas.1} parent=31 // pred_check
        %p1286 = pneg %p280
      $region38: #{aspp_pallas.1} parent=31 // pred_check_branch
        %1288 = sbr.rel (%p1286) target = $region40
      $region39: #{aspp_pallas.1} parent=31 // pred_region
        %v1289 = vld [vmem:[#allocation2] sm:$0xff]
        %v1290 = vld [vmem:[#allocation2 + $0x8] sm:$0xff]
        %v1291 = vld [vmem:[#allocation2 + $0x10] sm:$0xff]
        %v1292 = vld [vmem:[#allocation2 + $0x18] sm:$0xff]
        %v1293 = vld [vmem:[#allocation2 + $0x20] sm:$0xff]
        %v1294 = vld [vmem:[#allocation2 + $0x28] sm:$0xff]
        %v1295 = vld [vmem:[#allocation2 + $0x30] sm:$0xff]
        %v1296 = vld [vmem:[#allocation2 + $0x38] sm:$0xff]
        %v1297 = vld [vmem:[#allocation2 + $0x40] sm:$0xff]
        %v1298 = vld [vmem:[#allocation2 + $0x48] sm:$0xff]
        %v1299 = vld [vmem:[#allocation2 + $0x50] sm:$0xff]
        %v1300 = vld [vmem:[#allocation2 + $0x58] sm:$0xff]
        %v1301 = vld [vmem:[#allocation2 + $0x60] sm:$0xff]
        %v1302 = vld [vmem:[#allocation2 + $0x68] sm:$0xff]
        %v1303 = vld [vmem:[#allocation2 + $0x70] sm:$0xff]
        %v1304 = vld [vmem:[#allocation2 + $0x78] sm:$0xff]
        %v1305 = vld [vmem:[#allocation2 + $0x80] sm:$0xff]
        %v1306 = vld [vmem:[#allocation2 + $0x88] sm:$0xff]
        %v1307 = vld [vmem:[#allocation2 + $0x90] sm:$0xff]
        %v1308 = vld [vmem:[#allocation2 + $0x98] sm:$0xff]
        %v1309 = vld [vmem:[#allocation2 + $0xa0] sm:$0xff]
        %v1310 = vld [vmem:[#allocation2 + $0xa8] sm:$0xff]
        %v1311 = vld [vmem:[#allocation2 + $0xb0] sm:$0xff]
        %v1312 = vld [vmem:[#allocation2 + $0xb8] sm:$0xff]
        %v1313 = vld [vmem:[#allocation2 + $0xc0] sm:$0xff]
        %v1314 = vld [vmem:[#allocation2 + $0xc8] sm:$0xff]
        %v1315 = vld [vmem:[#allocation2 + $0xd0] sm:$0xff]
        %v1316 = vld [vmem:[#allocation2 + $0xd8] sm:$0xff]
        %v1317 = vld [vmem:[#allocation2 + $0xe0] sm:$0xff]
        %v1318 = vld [vmem:[#allocation2 + $0xe8] sm:$0xff]
        %v1319 = vld [vmem:[#allocation2 + $0xf0] sm:$0xff]
        %v1320 = vld [vmem:[#allocation2 + $0xf8] sm:$0xff]
        %v1321 = vld [vmem:[#allocation2 + $0x100] sm:$0xff]
        %v1322 = vld [vmem:[#allocation2 + $0x108] sm:$0xff]
        %v1323 = vld [vmem:[#allocation2 + $0x110] sm:$0xff]
        %v1324 = vld [vmem:[#allocation2 + $0x118] sm:$0xff]
        %v1325 = vld [vmem:[#allocation2 + $0x120] sm:$0xff]
        %v1326 = vld [vmem:[#allocation2 + $0x128] sm:$0xff]
        %v1327 = vld [vmem:[#allocation2 + $0x130] sm:$0xff]
        %v1328 = vld [vmem:[#allocation2 + $0x138] sm:$0xff]
        %v1329 = vld [vmem:[#allocation2 + $0x140] sm:$0xff]
        %v1330 = vld [vmem:[#allocation2 + $0x148] sm:$0xff]
        %v1331 = vld [vmem:[#allocation2 + $0x150] sm:$0xff]
        %v1332 = vld [vmem:[#allocation2 + $0x158] sm:$0xff]
        %v1333 = vld [vmem:[#allocation2 + $0x160] sm:$0xff]
        %v1334 = vld [vmem:[#allocation2 + $0x168] sm:$0xff]
        %v1335 = vld [vmem:[#allocation2 + $0x170] sm:$0xff]
        %v1336 = vld [vmem:[#allocation2 + $0x178] sm:$0xff]
        %v1337 = vld [vmem:[#allocation2 + $0x180] sm:$0xff]
        %v1338 = vld [vmem:[#allocation2 + $0x188] sm:$0xff]
        %v1339 = vld [vmem:[#allocation2 + $0x190] sm:$0xff]
        %v1340 = vld [vmem:[#allocation2 + $0x198] sm:$0xff]
        %v1341 = vld [vmem:[#allocation2 + $0x1a0] sm:$0xff]
        %v1342 = vld [vmem:[#allocation2 + $0x1a8] sm:$0xff]
        %v1343 = vld [vmem:[#allocation2 + $0x1b0] sm:$0xff]
        %v1344 = vld [vmem:[#allocation2 + $0x1b8] sm:$0xff]
        %v1345 = vld [vmem:[#allocation2 + $0x1c0] sm:$0xff]
        %v1346 = vld [vmem:[#allocation2 + $0x1c8] sm:$0xff]
        %v1347 = vld [vmem:[#allocation2 + $0x1d0] sm:$0xff]
        %v1348 = vld [vmem:[#allocation2 + $0x1d8] sm:$0xff]
        %v1349 = vld [vmem:[#allocation2 + $0x1e0] sm:$0xff]
        %v1350 = vld [vmem:[#allocation2 + $0x1e8] sm:$0xff]
        %v1351 = vld [vmem:[#allocation2 + $0x1f0] sm:$0xff]
        %v1352 = vld [vmem:[#allocation2 + $0x1f8] sm:$0xff]
        %v1353 = vpack.c.bf16 %v1290, %v1289
        %v1354 = vpack.c.bf16 %v1292, %v1291
        %v1355 = vpack.c.bf16 %v1294, %v1293
        %v1356 = vpack.c.bf16 %v1296, %v1295
        %v1357 = vpack.c.bf16 %v1298, %v1297
        %v1358 = vpack.c.bf16 %v1300, %v1299
        %v1359 = vpack.c.bf16 %v1302, %v1301
        %v1360 = vpack.c.bf16 %v1304, %v1303
        %v1361 = vpack.c.bf16 %v1306, %v1305
        %v1362 = vpack.c.bf16 %v1308, %v1307
        %v1363 = vpack.c.bf16 %v1310, %v1309
        %v1364 = vpack.c.bf16 %v1312, %v1311
        %v1365 = vpack.c.bf16 %v1314, %v1313
        %v1366 = vpack.c.bf16 %v1316, %v1315
        %v1367 = vpack.c.bf16 %v1318, %v1317
        %v1368 = vpack.c.bf16 %v1320, %v1319
        %v1369 = vpack.c.bf16 %v1322, %v1321
        %v1370 = vpack.c.bf16 %v1324, %v1323
        %v1371 = vpack.c.bf16 %v1326, %v1325
        %v1372 = vpack.c.bf16 %v1328, %v1327
        %v1373 = vpack.c.bf16 %v1330, %v1329
        %v1374 = vpack.c.bf16 %v1332, %v1331
        %v1375 = vpack.c.bf16 %v1334, %v1333
        %v1376 = vpack.c.bf16 %v1336, %v1335
        %v1377 = vpack.c.bf16 %v1338, %v1337
        %v1378 = vpack.c.bf16 %v1340, %v1339
        %v1379 = vpack.c.bf16 %v1342, %v1341
        %v1380 = vpack.c.bf16 %v1344, %v1343
        %v1381 = vpack.c.bf16 %v1346, %v1345
        %v1382 = vpack.c.bf16 %v1348, %v1347
        %v1383 = vpack.c.bf16 %v1350, %v1349
        %v1384 = vpack.c.bf16 %v1352, %v1351
        %1385 = vst [vmem:[%s278] sm:$0xff] %v1353
        %1386 = vst [vmem:[%s278 + $0x8] sm:$0xff] %v1354
        %1387 = vst [vmem:[%s278 + $0x10] sm:$0xff] %v1355
        %1388 = vst [vmem:[%s278 + $0x18] sm:$0xff] %v1356
        %1389 = vst [vmem:[%s278 + $0x20] sm:$0xff] %v1357
        %1390 = vst [vmem:[%s278 + $0x28] sm:$0xff] %v1358
        %1391 = vst [vmem:[%s278 + $0x30] sm:$0xff] %v1359
        %1392 = vst [vmem:[%s278 + $0x38] sm:$0xff] %v1360
        %1393 = vst [vmem:[%s278 + $0x40] sm:$0xff] %v1361
        %1394 = vst [vmem:[%s278 + $0x48] sm:$0xff] %v1362
        %1395 = vst [vmem:[%s278 + $0x50] sm:$0xff] %v1363
        %1396 = vst [vmem:[%s278 + $0x58] sm:$0xff] %v1364
        %1397 = vst [vmem:[%s278 + $0x60] sm:$0xff] %v1365
        %1398 = vst [vmem:[%s278 + $0x68] sm:$0xff] %v1366
        %1399 = vst [vmem:[%s278 + $0x70] sm:$0xff] %v1367
        %1400 = vst [vmem:[%s278 + $0x78] sm:$0xff] %v1368
        %1401 = vst [vmem:[%s278 + $0x80] sm:$0xff] %v1369
        %1402 = vst [vmem:[%s278 + $0x88] sm:$0xff] %v1370
        %1403 = vst [vmem:[%s278 + $0x90] sm:$0xff] %v1371
        %1404 = vst [vmem:[%s278 + $0x98] sm:$0xff] %v1372
        %1405 = vst [vmem:[%s278 + $0xa0] sm:$0xff] %v1373
        %1406 = vst [vmem:[%s278 + $0xa8] sm:$0xff] %v1374
        %1407 = vst [vmem:[%s278 + $0xb0] sm:$0xff] %v1375
        %1408 = vst [vmem:[%s278 + $0xb8] sm:$0xff] %v1376
        %1409 = vst [vmem:[%s278 + $0xc0] sm:$0xff] %v1377
        %1410 = vst [vmem:[%s278 + $0xc8] sm:$0xff] %v1378
        %1411 = vst [vmem:[%s278 + $0xd0] sm:$0xff] %v1379
        %1412 = vst [vmem:[%s278 + $0xd8] sm:$0xff] %v1380
        %1413 = vst [vmem:[%s278 + $0xe0] sm:$0xff] %v1381
        %1414 = vst [vmem:[%s278 + $0xe8] sm:$0xff] %v1382
        %1415 = vst [vmem:[%s278 + $0xf0] sm:$0xff] %v1383
        %1416 = vst [vmem:[%s278 + $0xf8] sm:$0xff] %v1384
      $region40: #{aspp_pallas.1} parent=31 // pred_fallthru
        _
      %s1417 = smul.u32 32, %s20
      %p1418 = scmp.lt.s32.totalorder %s19, 1
      %s1419 = scalar_select %p1418, %s19, 1
      %p1420 = scmp.lt.s32.totalorder %s1417, 31
      %s1421 = scalar_select %p1420, %s1417, 31
      %s1422 = smul.addr %s1421, 2
      %s1423 = smul.addr %s1419, 64
      %s1424 = sadd.s32 %s1422, %s1423
      %s1425 = smul.addr %s1424, 4
      %s1426 = scalar_lea.vmem %s3, %s1425
      // Predicated region
      $region41: #{aspp_pallas.1} parent=31 // pred_check
        %p1427 = pneg %p135
      $region42: #{aspp_pallas.1} parent=31 // pred_check_branch
        %1429 = sbr.rel (%p1427) target = $region44
      $region43: #{aspp_pallas.1} parent=31 // pred_region
        %s1430 = smul.u32 32, %s20
      $region44: #{aspp_pallas.1} parent=31 // pred_fallthru
        _
    $region32: #{aspp_pallas.1} parent=5 // pred_fallthru
      _
    %p1431 = scmp.le.s32.totalorder 2, %s9
    // Predicated region
    $region45: #{aspp_pallas.1} parent=5 // pred_check
      %p1432 = pneg %p1431
    $region46: #{aspp_pallas.1} parent=5 // pred_check_branch
      %1434 = sbr.rel (%p1432) target = $region48
    $region47: #{aspp_pallas.1} parent=5 // pred_region
      %s1435 = ssub.s32 %s9, 2
      // Predicated region
      $region49: #{aspp_pallas.1} parent=47 // pred_check
        %p1436 = pneg %p141
      $region50: #{aspp_pallas.1} parent=47 // pred_check_branch
        %1438 = sbr.rel (%p1436) target = $region52
      $region51: #{aspp_pallas.1} parent=47 // pred_region
        %s1439 = smul.u32 32, %s23
        %p1440 = scmp.lt.s32.totalorder %s22, 1
        %s1441 = scalar_select %p1440, %s22, 1
        %p1442 = scmp.lt.s32.totalorder %s1439, 31
        %s1443 = scalar_select %p1442, %s1439, 31
        %s1444 = smul.addr %s1443, 2
        %s1445 = smul.addr %s1441, 64
        %s1446 = sadd.s32 %s1444, %s1445
        %s1447 = smul.addr %s1446, 4
        %s1448 = scalar_lea.vmem %s3, %s1447
      $region52: #{aspp_pallas.1} parent=47 // pred_fallthru
        _
    $region48: #{aspp_pallas.1} parent=5 // pred_fallthru
      _
  $region6: #{aspp_pallas.1} parent=0 // loop_footer
    %s13 = sadd.s32 1, %s9
  $region7: #{aspp_pallas.1} parent=0 // loop_footer_branch
    %8 = sbr.rel target = $region3
  $region8: #{aspp_pallas.1} parent=0 // loop_exit
    _

</llo_original>
